<compile_context>
chip_gen: v7x
topology: tpu7x:2x2x1
jax: 0.10.0
libtpu: 0.0.40
codegen_flags: <defaults>
</compile_context>

<pallas_src>
import functools

import jax
import jax.numpy as jnp
from jax.experimental import pallas as pl
from jax.experimental.pallas import tpu as pltpu

EPS = 1e-5      # PyTorch nn.LayerNorm default eps
LANE = 128
SUBLANE = 8


def _round_up(x, m):
    return ((x + m - 1) // m) * m


# ---------------------------------------------------------------- kernel ----

def _layernorm(x, g, b, n_real, mask):
    """LayerNorm over the first `n_real` lanes of a lane-padded activation.

    Padded lanes are assumed zero on input; with zero-padded gamma/beta they
    stay exactly zero on output.  `mask is None` means no lane padding.
    """
    inv_n = 1.0 / n_real
    mu = jnp.sum(x, axis=-1, keepdims=True) * inv_n
    cent = x - mu
    if mask is not None:
        cent = jnp.where(mask, cent, 0.0)
    var = jnp.sum(cent * cent, axis=-1, keepdims=True) * inv_n
    return cent * jax.lax.rsqrt(var + EPS) * g + b


def mlp_fused_kernel(x_ref, w_in_ref, b_in_ref,
                     g_ref, beta_ref, w1_ref, b1_ref, w2_ref, b2_ref,
                     gf_ref, bf_ref, w_out_ref, b_out_ref,
                     o_ref, *, n_embd, e_pad, num_layers):
    """Whole-network forward for one batch tile.

    All matmuls run bf16 x bf16 on the MXU with f32 accumulation; all
    element-wise math is f32 on the VPU.
    """
    x = x_ref[...]                                           # (TB, D_pad) f32
    h = jnp.dot(x.astype(jnp.bfloat16), w_in_ref[...],
                preferred_element_type=jnp.float32) + b_in_ref[...]

    # Lane mask for the real feature width; hoisted once, reused in every LN.
    if n_embd == e_pad:
        mask = None
    else:
        mask = jax.lax.broadcasted_iota(jnp.int32, h.shape, 1) < n_embd

    def feedforward(t, g, beta, w1, b1, w2, b2):
        hn = _layernorm(t, g, beta, n_embd, mask)
        a = jnp.dot(hn.astype(jnp.bfloat16), w1,
                    preferred_element_type=jnp.float32) + b1
        a = jnp.maximum(a, 0.0)                              # ReLU
        # TODO(synk): nn.Dropout is identity in eval mode; training-mode
        # dropout (pltpu.prng_*) not implemented.
        return jnp.dot(a.astype(jnp.bfloat16), w2,
                       preferred_element_type=jnp.float32) + b2

    # Small num_layers -> Python-unroll; weights stay resident in VMEM.
    for l in range(num_layers):
        g, beta = g_ref[l], beta_ref[l]
        w1, b1 = w1_ref[l], b1_ref[l]
        w2, b2 = w2_ref[l], b2_ref[l]
        h = h + feedforward(h, g, beta, w1, b1, w2, b2)      # out = out + layer(out)
        h = feedforward(h, g, beta, w1, b1, w2, b2)          # out = layer(out)

    hn = _layernorm(h, gf_ref[...], bf_ref[...], n_embd, mask)
    logits = jnp.dot(hn.astype(jnp.bfloat16), w_out_ref[...],
                     preferred_element_type=jnp.float32) + b_out_ref[...]
    o_ref[...] = logits.astype(o_ref.dtype)


# --------------------------------------------------------------- wrapper ----

def mlp_forward(params, x):
    """Forward pass matching MultiLayerPerceptron.forward (eval mode)."""
    B = x.shape[0]
    x_flat = x.reshape(B, -1).astype(jnp.float32)            # nn.Flatten
    D = x_flat.shape[1]
    n_embd = params["in_w"].shape[1]
    out_dim = params["out_w"].shape[1]
    num_layers = len(params["layers"])

    # Lane/sublane-dense padded sizes.
    D_pad = _round_up(D, LANE)
    E_pad = _round_up(n_embd, LANE)
    H_pad = _round_up(4 * n_embd, LANE)
    O_pad = _round_up(out_dim, LANE)
    TB = 256 if B > 256 else _round_up(B, SUBLANE)            # batch tile
    B_pad = _round_up(B, TB)

    def pad2(a, r, c, dtype):
        a = a.astype(dtype)
        return jnp.pad(a, ((0, r - a.shape[0]), (0, c - a.shape[1])))

    # ---- pad activations, pad + cast parameters ----------------------------
    xw = jnp.pad(x_flat, ((0, B_pad - B), (0, D_pad - D)))
    w_in = pad2(params["in_w"], D_pad, E_pad, jnp.bfloat16)
    b_in = pad2(params["in_b"], 1, E_pad, jnp.float32)

    layers = params["layers"]
    g_s    = jnp.stack([pad2(lp[0], 1, E_pad, jnp.float32)      for lp in layers])
    beta_s = jnp.stack([pad2(lp[1], 1, E_pad, jnp.float32)      for lp in layers])
    w1_s   = jnp.stack([pad2(lp[2], E_pad, H_pad, jnp.bfloat16) for lp in layers])
    b1_s   = jnp.stack([pad2(lp[3], 1, H_pad, jnp.float32)      for lp in layers])
    w2_s   = jnp.stack([pad2(lp[4], H_pad, E_pad, jnp.bfloat16) for lp in layers])
    b2_s   = jnp.stack([pad2(lp[5], 1, E_pad, jnp.float32)      for lp in layers])

    gf = pad2(params["lnf_g"], 1, E_pad, jnp.float32)
    bf = pad2(params["lnf_b"], 1, E_pad, jnp.float32)
    w_out = pad2(params["out_w"], E_pad, O_pad, jnp.bfloat16)
    b_out = pad2(params["out_b"], 1, O_pad, jnp.float32)

    # ---- BlockSpecs: activations tiled over batch, params fixed ------------
    def fixed(shape):
        nd = len(shape)
        return pl.BlockSpec(shape, lambda i, _nd=nd: (0,) * _nd)

    in_specs = [
        pl.BlockSpec((TB, D_pad), lambda i: (i, 0)),          # x
        fixed((D_pad, E_pad)),                                # w_in
        fixed((1, E_pad)),                                    # b_in
        fixed((num_layers, 1, E_pad)),                        # ln gamma (stacked)
        fixed((num_layers, 1, E_pad)),                        # ln beta  (stacked)
        fixed((num_layers, E_pad, H_pad)),                    # w1 (stacked)
        fixed((num_layers, 1, H_pad)),                        # b1 (stacked)
        fixed((num_layers, H_pad, E_pad)),                    # w2 (stacked)
        fixed((num_layers, 1, E_pad)),                        # b2 (stacked)
        fixed((1, E_pad)),                                    # ln_f gamma
        fixed((1, E_pad)),                                    # ln_f beta
        fixed((E_pad, O_pad)),                                # w_out
        fixed((1, O_pad)),                                    # b_out
    ]
    out_spec = pl.BlockSpec((TB, O_pad), lambda i: (i, 0))

    kernel = functools.partial(mlp_fused_kernel,
                               n_embd=n_embd, e_pad=E_pad, num_layers=num_layers)

    out_pad = pl.pallas_call(
        kernel,
        out_shape=jax.ShapeDtypeStruct((B_pad, O_pad), jnp.float32),
        grid=(B_pad // TB,),
        in_specs=in_specs,
        out_specs=out_spec,
        compiler_params=pltpu.CompilerParams(
            dimension_semantics=("parallel",)),               # v7x: shard batch over TCs
    )(xw, w_in, b_in, g_s, beta_s, w1_s, b1_s, w2_s, b2_s,
      gf, bf, w_out, b_out)

    return out_pad[:B, :out_dim]


# ----------------------------------------------------- deterministic init ---

def init_params(key, input_dim, output_dim, num_layers, n_embd):
    def linear_init(k, fan_in, fan_out):
        kw, kb = jax.random.split(k)
        bound = 1.0 / jnp.sqrt(fan_in)
        w = jax.random.uniform(kw, (fan_in, fan_out), jnp.float32, -bound, bound)
        b = jax.random.uniform(kb, (1, fan_out), jnp.float32, -bound, bound)
        return w, b

    keys = jax.random.split(key, num_layers * 2 + 2)
    in_w, in_b = linear_init(keys[0], input_dim, n_embd)
    layers = []
    for i in range(num_layers):
        w1, b1 = linear_init(keys[1 + 2 * i], n_embd, 4 * n_embd)
        w2, b2 = linear_init(keys[2 + 2 * i], 4 * n_embd, n_embd)
        g = jnp.ones((1, n_embd), jnp.float32)       # LayerNorm weight
        beta = jnp.zeros((1, n_embd), jnp.float32)   # LayerNorm bias
        layers.append((g, beta, w1, b1, w2, b2))
    out_w, out_b = linear_init(keys[-1], n_embd, output_dim)
    return {
        "in_w": in_w, "in_b": in_b,
        "layers": layers,
        "lnf_g": jnp.ones((1, n_embd), jnp.float32),
        "lnf_b": jnp.zeros((1, n_embd), jnp.float32),
        "out_w": out_w, "out_b": out_b,
    }


# ------------------------------------------------- pure-JAX reference ------

def _ref_forward(params, x):
    """Pure-JAX reference mirroring the kernel's bf16-at-the-MXU casting."""
    def dot(a, w):
        return jnp.dot(a.astype(jnp.bfloat16), w.astype(jnp.bfloat16),
                       preferred_element_type=jnp.float32)

    def ln(t, g, b):
        mu = jnp.mean(t, axis=-1, keepdims=True)
        var = jnp.mean(jnp.square(t - mu), axis=-1, keepdims=True)
        return (t - mu) * jax.lax.rsqrt(var + EPS) * g + b

    def ff(t, lp):
        g, beta, w1, b1, w2, b2 = lp
        h = ln(t, g, beta)
        return dot(jnp.maximum(dot(h, w1) + b1, 0.0), w2) + b2

    out = dot(x.reshape(x.shape[0], -1), params["in_w"]) + params["in_b"]
    for lp in params["layers"]:
        out = out + ff(out, lp)
        out = ff(out, lp)
    out = ln(out, params["lnf_g"], params["lnf_b"])
    return dot(out, params["out_w"]) + params["out_b"]


# ------------------------------------------------------------------ main ---

if __name__ == "__main__":
    # Small MNIST-like config: x is NCHW (B=2, C=1, H=8, W=8) -> input_dim=64.
    B, C, H, W = 2, 1, 8, 8
    input_dim = C * H * W
    n_embd = 32
    output_dim = 10
    num_layers = 2

    key = jax.random.PRNGKey(0)
    kx, kp = jax.random.split(key)
    x = jax.random.normal(kx, (B, C, H, W), jnp.float32)
    params = init_params(kp, input_dim, output_dim, num_layers, n_embd)

    out = mlp_forward(params, x)
    out = jax.block_until_ready(out)

    ref = _ref_forward(params, x)
    assert out.shape == (B, output_dim), out.shape
    assert jnp.allclose(out, ref, atol=1e-2, rtol=1e-2), "mismatch vs reference"

    print("KERNEL_OK")
</pallas_src>

<mosaic_0001>
module attributes {stable_mosaic.version = 11 : i64} {
  func.func @mlp_fused_kernel(%arg0: i32, %arg1: memref<8x128xf32, #tpu.memory_space<vmem>>, %arg2: memref<128x128xbf16, #tpu.memory_space<vmem>>, %arg3: memref<1x128xf32, #tpu.memory_space<vmem>>, %arg4: memref<2x1x128xf32, #tpu.memory_space<vmem>>, %arg5: memref<2x1x128xf32, #tpu.memory_space<vmem>>, %arg6: memref<2x128x128xbf16, #tpu.memory_space<vmem>>, %arg7: memref<2x1x128xf32, #tpu.memory_space<vmem>>, %arg8: memref<2x128x128xbf16, #tpu.memory_space<vmem>>, %arg9: memref<2x1x128xf32, #tpu.memory_space<vmem>>, %arg10: memref<1x128xf32, #tpu.memory_space<vmem>>, %arg11: memref<1x128xf32, #tpu.memory_space<vmem>>, %arg12: memref<128x128xbf16, #tpu.memory_space<vmem>>, %arg13: memref<1x128xf32, #tpu.memory_space<vmem>>, %arg14: memref<8x128xf32, #tpu.memory_space<vmem>>) attributes {dimension_semantics = [#tpu.dimension_semantics<parallel>], iteration_bounds = array<i64: 1>, scalar_prefetch = 0 : i64, scratch_operands = 0 : i64, tpu.core_type = #tpu.core_type<tc>, window_params = [{transform_indices = @transform_0, window_bounds = array<i64: 8, 128>}, {pipeline_mode = #tpu.pipeline_mode<synchronous>, transform_indices = @transform_1, window_bounds = array<i64: 128, 128>}, {pipeline_mode = #tpu.pipeline_mode<synchronous>, transform_indices = @transform_2, window_bounds = array<i64: 1, 128>}, {pipeline_mode = #tpu.pipeline_mode<synchronous>, transform_indices = @transform_3, window_bounds = array<i64: 2, 1, 128>}, {pipeline_mode = #tpu.pipeline_mode<synchronous>, transform_indices = @transform_4, window_bounds = array<i64: 2, 1, 128>}, {pipeline_mode = #tpu.pipeline_mode<synchronous>, transform_indices = @transform_5, window_bounds = array<i64: 2, 128, 128>}, {pipeline_mode = #tpu.pipeline_mode<synchronous>, transform_indices = @transform_6, window_bounds = array<i64: 2, 1, 128>}, {pipeline_mode = #tpu.pipeline_mode<synchronous>, transform_indices = @transform_7, window_bounds = array<i64: 2, 128, 128>}, {pipeline_mode = #tpu.pipeline_mode<synchronous>, transform_indices = @transform_8, window_bounds = array<i64: 2, 1, 128>}, {pipeline_mode = #tpu.pipeline_mode<synchronous>, transform_indices = @transform_9, window_bounds = array<i64: 1, 128>}, {pipeline_mode = #tpu.pipeline_mode<synchronous>, transform_indices = @transform_10, window_bounds = array<i64: 1, 128>}, {pipeline_mode = #tpu.pipeline_mode<synchronous>, transform_indices = @transform_11, window_bounds = array<i64: 128, 128>}, {pipeline_mode = #tpu.pipeline_mode<synchronous>, transform_indices = @transform_12, window_bounds = array<i64: 1, 128>}, {transform_indices = @transform_13, window_bounds = array<i64: 8, 128>}]} {
    %c0 = arith.constant 0 : index
    %c0_0 = arith.constant 0 : index
    %0 = vector.load %arg1[%c0, %c0_0] : memref<8x128xf32, #tpu.memory_space<vmem>>, vector<8x128xf32>
    %1 = arith.truncf %0 : vector<8x128xf32> to vector<8x128xbf16>
    %c0_1 = arith.constant 0 : index
    %c0_2 = arith.constant 0 : index
    %2 = vector.load %arg2[%c0_1, %c0_2] : memref<128x128xbf16, #tpu.memory_space<vmem>>, vector<128x128xbf16>
    %cst = arith.constant dense<0.000000e+00> : vector<8x128xf32>
    %3 = tpu.matmul %1, %2, %cst {dimension_numbers = #tpu.dot_dimension_numbers<[1], [0], [0], [1], [0, 0, 1, 1], [], []>} : vector<8x128xbf16>, vector<128x128xbf16>, vector<8x128xf32> -> vector<8x128xf32>
    %c0_3 = arith.constant 0 : index
    %c0_4 = arith.constant 0 : index
    %4 = vector.load %arg3[%c0_3, %c0_4] : memref<1x128xf32, #tpu.memory_space<vmem>>, vector<1x128xf32>
    %5 = vector.broadcast %4 : vector<1x128xf32> to vector<8x128xf32>
    %6 = arith.addf %3, %5 : vector<8x128xf32>
    %7 = tpu.iota {dimensions = array<i32: 1>} : vector<8x128xi32>
    %c32_i32 = arith.constant 32 : i32
    %8 = vector.broadcast %c32_i32 : i32 to vector<8x128xi32>
    %9 = arith.cmpi slt, %7, %8 : vector<8x128xi32>
    %c0_5 = arith.constant 0 : index
    %c0_6 = arith.constant 0 : index
    %c0_7 = arith.constant 0 : index
    %10 = vector.load %arg4[%c0_5, %c0_6, %c0_7] : memref<2x1x128xf32, #tpu.memory_space<vmem>>, vector<1x1x128xf32>
    %11 = vector.shape_cast %10 : vector<1x1x128xf32> to vector<1x128xf32>
    %c0_8 = arith.constant 0 : index
    %c0_9 = arith.constant 0 : index
    %c0_10 = arith.constant 0 : index
    %12 = vector.load %arg5[%c0_8, %c0_9, %c0_10] : memref<2x1x128xf32, #tpu.memory_space<vmem>>, vector<1x1x128xf32>
    %13 = vector.shape_cast %12 : vector<1x1x128xf32> to vector<1x128xf32>
    %c0_11 = arith.constant 0 : index
    %c0_12 = arith.constant 0 : index
    %c0_13 = arith.constant 0 : index
    %14 = vector.load %arg6[%c0_11, %c0_12, %c0_13] : memref<2x128x128xbf16, #tpu.memory_space<vmem>>, vector<1x128x128xbf16>
    %15 = vector.shape_cast %14 : vector<1x128x128xbf16> to vector<128x128xbf16>
    %c0_14 = arith.constant 0 : index
    %c0_15 = arith.constant 0 : index
    %c0_16 = arith.constant 0 : index
    %16 = vector.load %arg7[%c0_14, %c0_15, %c0_16] : memref<2x1x128xf32, #tpu.memory_space<vmem>>, vector<1x1x128xf32>
    %17 = vector.shape_cast %16 : vector<1x1x128xf32> to vector<1x128xf32>
    %c0_17 = arith.constant 0 : index
    %c0_18 = arith.constant 0 : index
    %c0_19 = arith.constant 0 : index
    %18 = vector.load %arg8[%c0_17, %c0_18, %c0_19] : memref<2x128x128xbf16, #tpu.memory_space<vmem>>, vector<1x128x128xbf16>
    %19 = vector.shape_cast %18 : vector<1x128x128xbf16> to vector<128x128xbf16>
    %c0_20 = arith.constant 0 : index
    %c0_21 = arith.constant 0 : index
    %c0_22 = arith.constant 0 : index
    %20 = vector.load %arg9[%c0_20, %c0_21, %c0_22] : memref<2x1x128xf32, #tpu.memory_space<vmem>>, vector<1x1x128xf32>
    %21 = vector.shape_cast %20 : vector<1x1x128xf32> to vector<1x128xf32>
    %cst_23 = arith.constant dense<0.000000e+00> : vector<8xf32>
    %22 = vector.multi_reduction <add>, %6, %cst_23 [1] : vector<8x128xf32> to vector<8xf32>
    %23 = vector.shape_cast %22 : vector<8xf32> to vector<8x1xf32>
    %cst_24 = arith.constant 3.125000e-02 : f32
    %24 = vector.broadcast %cst_24 : f32 to vector<8x1xf32>
    %25 = arith.mulf %23, %24 : vector<8x1xf32>
    %26 = vector.broadcast %25 : vector<8x1xf32> to vector<8x128xf32>
    %27 = arith.subf %6, %26 : vector<8x128xf32>
    %cst_25 = arith.constant 0.000000e+00 : f32
    %28 = vector.broadcast %cst_25 : f32 to vector<8x128xf32>
    %29 = arith.select %9, %27, %28 : vector<8x128xi1>, vector<8x128xf32>
    %30 = arith.mulf %29, %29 : vector<8x128xf32>
    %cst_26 = arith.constant dense<0.000000e+00> : vector<8xf32>
    %31 = vector.multi_reduction <add>, %30, %cst_26 [1] : vector<8x128xf32> to vector<8xf32>
    %32 = vector.shape_cast %31 : vector<8xf32> to vector<8x1xf32>
    %cst_27 = arith.constant 3.125000e-02 : f32
    %33 = vector.broadcast %cst_27 : f32 to vector<8x1xf32>
    %34 = arith.mulf %32, %33 : vector<8x1xf32>
    %cst_28 = arith.constant 9.99999974E-6 : f32
    %35 = vector.broadcast %cst_28 : f32 to vector<8x1xf32>
    %36 = arith.addf %34, %35 : vector<8x1xf32>
    %37 = math.rsqrt %36 : vector<8x1xf32>
    %38 = vector.broadcast %37 : vector<8x1xf32> to vector<8x128xf32>
    %39 = arith.mulf %29, %38 : vector<8x128xf32>
    %40 = vector.broadcast %11 : vector<1x128xf32> to vector<8x128xf32>
    %41 = arith.mulf %39, %40 : vector<8x128xf32>
    %42 = vector.broadcast %13 : vector<1x128xf32> to vector<8x128xf32>
    %43 = arith.addf %41, %42 : vector<8x128xf32>
    %44 = arith.truncf %43 : vector<8x128xf32> to vector<8x128xbf16>
    %cst_29 = arith.constant dense<0.000000e+00> : vector<8x128xf32>
    %45 = tpu.matmul %44, %15, %cst_29 {dimension_numbers = #tpu.dot_dimension_numbers<[1], [0], [0], [1], [0, 0, 1, 1], [], []>} : vector<8x128xbf16>, vector<128x128xbf16>, vector<8x128xf32> -> vector<8x128xf32>
    %46 = vector.broadcast %17 : vector<1x128xf32> to vector<8x128xf32>
    %47 = arith.addf %45, %46 : vector<8x128xf32>
    %cst_30 = arith.constant 0.000000e+00 : f32
    %48 = vector.broadcast %cst_30 : f32 to vector<8x128xf32>
    %49 = arith.maximumf %47, %48 : vector<8x128xf32>
    %50 = arith.truncf %49 : vector<8x128xf32> to vector<8x128xbf16>
    %cst_31 = arith.constant dense<0.000000e+00> : vector<8x128xf32>
    %51 = tpu.matmul %50, %19, %cst_31 {dimension_numbers = #tpu.dot_dimension_numbers<[1], [0], [0], [1], [0, 0, 1, 1], [], []>} : vector<8x128xbf16>, vector<128x128xbf16>, vector<8x128xf32> -> vector<8x128xf32>
    %52 = vector.broadcast %21 : vector<1x128xf32> to vector<8x128xf32>
    %53 = arith.addf %51, %52 : vector<8x128xf32>
    %54 = arith.addf %6, %53 : vector<8x128xf32>
    %cst_32 = arith.constant dense<0.000000e+00> : vector<8xf32>
    %55 = vector.multi_reduction <add>, %54, %cst_32 [1] : vector<8x128xf32> to vector<8xf32>
    %56 = vector.shape_cast %55 : vector<8xf32> to vector<8x1xf32>
    %cst_33 = arith.constant 3.125000e-02 : f32
    %57 = vector.broadcast %cst_33 : f32 to vector<8x1xf32>
    %58 = arith.mulf %56, %57 : vector<8x1xf32>
    %59 = vector.broadcast %58 : vector<8x1xf32> to vector<8x128xf32>
    %60 = arith.subf %54, %59 : vector<8x128xf32>
    %cst_34 = arith.constant 0.000000e+00 : f32
    %61 = vector.broadcast %cst_34 : f32 to vector<8x128xf32>
    %62 = arith.select %9, %60, %61 : vector<8x128xi1>, vector<8x128xf32>
    %63 = arith.mulf %62, %62 : vector<8x128xf32>
    %cst_35 = arith.constant dense<0.000000e+00> : vector<8xf32>
    %64 = vector.multi_reduction <add>, %63, %cst_35 [1] : vector<8x128xf32> to vector<8xf32>
    %65 = vector.shape_cast %64 : vector<8xf32> to vector<8x1xf32>
    %cst_36 = arith.constant 3.125000e-02 : f32
    %66 = vector.broadcast %cst_36 : f32 to vector<8x1xf32>
    %67 = arith.mulf %65, %66 : vector<8x1xf32>
    %cst_37 = arith.constant 9.99999974E-6 : f32
    %68 = vector.broadcast %cst_37 : f32 to vector<8x1xf32>
    %69 = arith.addf %67, %68 : vector<8x1xf32>
    %70 = math.rsqrt %69 : vector<8x1xf32>
    %71 = vector.broadcast %70 : vector<8x1xf32> to vector<8x128xf32>
    %72 = arith.mulf %62, %71 : vector<8x128xf32>
    %73 = vector.broadcast %11 : vector<1x128xf32> to vector<8x128xf32>
    %74 = arith.mulf %72, %73 : vector<8x128xf32>
    %75 = vector.broadcast %13 : vector<1x128xf32> to vector<8x128xf32>
    %76 = arith.addf %74, %75 : vector<8x128xf32>
    %77 = arith.truncf %76 : vector<8x128xf32> to vector<8x128xbf16>
    %cst_38 = arith.constant dense<0.000000e+00> : vector<8x128xf32>
    %78 = tpu.matmul %77, %15, %cst_38 {dimension_numbers = #tpu.dot_dimension_numbers<[1], [0], [0], [1], [0, 0, 1, 1], [], []>} : vector<8x128xbf16>, vector<128x128xbf16>, vector<8x128xf32> -> vector<8x128xf32>
    %79 = vector.broadcast %17 : vector<1x128xf32> to vector<8x128xf32>
    %80 = arith.addf %78, %79 : vector<8x128xf32>
    %cst_39 = arith.constant 0.000000e+00 : f32
    %81 = vector.broadcast %cst_39 : f32 to vector<8x128xf32>
    %82 = arith.maximumf %80, %81 : vector<8x128xf32>
    %83 = arith.truncf %82 : vector<8x128xf32> to vector<8x128xbf16>
    %cst_40 = arith.constant dense<0.000000e+00> : vector<8x128xf32>
    %84 = tpu.matmul %83, %19, %cst_40 {dimension_numbers = #tpu.dot_dimension_numbers<[1], [0], [0], [1], [0, 0, 1, 1], [], []>} : vector<8x128xbf16>, vector<128x128xbf16>, vector<8x128xf32> -> vector<8x128xf32>
    %85 = vector.broadcast %21 : vector<1x128xf32> to vector<8x128xf32>
    %86 = arith.addf %84, %85 : vector<8x128xf32>
    %c1 = arith.constant 1 : index
    %c0_41 = arith.constant 0 : index
    %c0_42 = arith.constant 0 : index
    %87 = vector.load %arg4[%c1, %c0_41, %c0_42] : memref<2x1x128xf32, #tpu.memory_space<vmem>>, vector<1x1x128xf32>
    %88 = vector.shape_cast %87 : vector<1x1x128xf32> to vector<1x128xf32>
    %c1_43 = arith.constant 1 : index
    %c0_44 = arith.constant 0 : index
    %c0_45 = arith.constant 0 : index
    %89 = vector.load %arg5[%c1_43, %c0_44, %c0_45] : memref<2x1x128xf32, #tpu.memory_space<vmem>>, vector<1x1x128xf32>
    %90 = vector.shape_cast %89 : vector<1x1x128xf32> to vector<1x128xf32>
    %c1_46 = arith.constant 1 : index
    %c0_47 = arith.constant 0 : index
    %c0_48 = arith.constant 0 : index
    %91 = vector.load %arg6[%c1_46, %c0_47, %c0_48] : memref<2x128x128xbf16, #tpu.memory_space<vmem>>, vector<1x128x128xbf16>
    %92 = vector.shape_cast %91 : vector<1x128x128xbf16> to vector<128x128xbf16>
    %c1_49 = arith.constant 1 : index
    %c0_50 = arith.constant 0 : index
    %c0_51 = arith.constant 0 : index
    %93 = vector.load %arg7[%c1_49, %c0_50, %c0_51] : memref<2x1x128xf32, #tpu.memory_space<vmem>>, vector<1x1x128xf32>
    %94 = vector.shape_cast %93 : vector<1x1x128xf32> to vector<1x128xf32>
    %c1_52 = arith.constant 1 : index
    %c0_53 = arith.constant 0 : index
    %c0_54 = arith.constant 0 : index
    %95 = vector.load %arg8[%c1_52, %c0_53, %c0_54] : memref<2x128x128xbf16, #tpu.memory_space<vmem>>, vector<1x128x128xbf16>
    %96 = vector.shape_cast %95 : vector<1x128x128xbf16> to vector<128x128xbf16>
    %c1_55 = arith.constant 1 : index
    %c0_56 = arith.constant 0 : index
    %c0_57 = arith.constant 0 : index
    %97 = vector.load %arg9[%c1_55, %c0_56, %c0_57] : memref<2x1x128xf32, #tpu.memory_space<vmem>>, vector<1x1x128xf32>
    %98 = vector.shape_cast %97 : vector<1x1x128xf32> to vector<1x128xf32>
    %cst_58 = arith.constant dense<0.000000e+00> : vector<8xf32>
    %99 = vector.multi_reduction <add>, %86, %cst_58 [1] : vector<8x128xf32> to vector<8xf32>
    %100 = vector.shape_cast %99 : vector<8xf32> to vector<8x1xf32>
    %cst_59 = arith.constant 3.125000e-02 : f32
    %101 = vector.broadcast %cst_59 : f32 to vector<8x1xf32>
    %102 = arith.mulf %100, %101 : vector<8x1xf32>
    %103 = vector.broadcast %102 : vector<8x1xf32> to vector<8x128xf32>
    %104 = arith.subf %86, %103 : vector<8x128xf32>
    %cst_60 = arith.constant 0.000000e+00 : f32
    %105 = vector.broadcast %cst_60 : f32 to vector<8x128xf32>
    %106 = arith.select %9, %104, %105 : vector<8x128xi1>, vector<8x128xf32>
    %107 = arith.mulf %106, %106 : vector<8x128xf32>
    %cst_61 = arith.constant dense<0.000000e+00> : vector<8xf32>
    %108 = vector.multi_reduction <add>, %107, %cst_61 [1] : vector<8x128xf32> to vector<8xf32>
    %109 = vector.shape_cast %108 : vector<8xf32> to vector<8x1xf32>
    %cst_62 = arith.constant 3.125000e-02 : f32
    %110 = vector.broadcast %cst_62 : f32 to vector<8x1xf32>
    %111 = arith.mulf %109, %110 : vector<8x1xf32>
    %cst_63 = arith.constant 9.99999974E-6 : f32
    %112 = vector.broadcast %cst_63 : f32 to vector<8x1xf32>
    %113 = arith.addf %111, %112 : vector<8x1xf32>
    %114 = math.rsqrt %113 : vector<8x1xf32>
    %115 = vector.broadcast %114 : vector<8x1xf32> to vector<8x128xf32>
    %116 = arith.mulf %106, %115 : vector<8x128xf32>
    %117 = vector.broadcast %88 : vector<1x128xf32> to vector<8x128xf32>
    %118 = arith.mulf %116, %117 : vector<8x128xf32>
    %119 = vector.broadcast %90 : vector<1x128xf32> to vector<8x128xf32>
    %120 = arith.addf %118, %119 : vector<8x128xf32>
    %121 = arith.truncf %120 : vector<8x128xf32> to vector<8x128xbf16>
    %cst_64 = arith.constant dense<0.000000e+00> : vector<8x128xf32>
    %122 = tpu.matmul %121, %92, %cst_64 {dimension_numbers = #tpu.dot_dimension_numbers<[1], [0], [0], [1], [0, 0, 1, 1], [], []>} : vector<8x128xbf16>, vector<128x128xbf16>, vector<8x128xf32> -> vector<8x128xf32>
    %123 = vector.broadcast %94 : vector<1x128xf32> to vector<8x128xf32>
    %124 = arith.addf %122, %123 : vector<8x128xf32>
    %cst_65 = arith.constant 0.000000e+00 : f32
    %125 = vector.broadcast %cst_65 : f32 to vector<8x128xf32>
    %126 = arith.maximumf %124, %125 : vector<8x128xf32>
    %127 = arith.truncf %126 : vector<8x128xf32> to vector<8x128xbf16>
    %cst_66 = arith.constant dense<0.000000e+00> : vector<8x128xf32>
    %128 = tpu.matmul %127, %96, %cst_66 {dimension_numbers = #tpu.dot_dimension_numbers<[1], [0], [0], [1], [0, 0, 1, 1], [], []>} : vector<8x128xbf16>, vector<128x128xbf16>, vector<8x128xf32> -> vector<8x128xf32>
    %129 = vector.broadcast %98 : vector<1x128xf32> to vector<8x128xf32>
    %130 = arith.addf %128, %129 : vector<8x128xf32>
    %131 = arith.addf %86, %130 : vector<8x128xf32>
    %cst_67 = arith.constant dense<0.000000e+00> : vector<8xf32>
    %132 = vector.multi_reduction <add>, %131, %cst_67 [1] : vector<8x128xf32> to vector<8xf32>
    %133 = vector.shape_cast %132 : vector<8xf32> to vector<8x1xf32>
    %cst_68 = arith.constant 3.125000e-02 : f32
    %134 = vector.broadcast %cst_68 : f32 to vector<8x1xf32>
    %135 = arith.mulf %133, %134 : vector<8x1xf32>
    %136 = vector.broadcast %135 : vector<8x1xf32> to vector<8x128xf32>
    %137 = arith.subf %131, %136 : vector<8x128xf32>
    %cst_69 = arith.constant 0.000000e+00 : f32
    %138 = vector.broadcast %cst_69 : f32 to vector<8x128xf32>
    %139 = arith.select %9, %137, %138 : vector<8x128xi1>, vector<8x128xf32>
    %140 = arith.mulf %139, %139 : vector<8x128xf32>
    %cst_70 = arith.constant dense<0.000000e+00> : vector<8xf32>
    %141 = vector.multi_reduction <add>, %140, %cst_70 [1] : vector<8x128xf32> to vector<8xf32>
    %142 = vector.shape_cast %141 : vector<8xf32> to vector<8x1xf32>
    %cst_71 = arith.constant 3.125000e-02 : f32
    %143 = vector.broadcast %cst_71 : f32 to vector<8x1xf32>
    %144 = arith.mulf %142, %143 : vector<8x1xf32>
    %cst_72 = arith.constant 9.99999974E-6 : f32
    %145 = vector.broadcast %cst_72 : f32 to vector<8x1xf32>
    %146 = arith.addf %144, %145 : vector<8x1xf32>
    %147 = math.rsqrt %146 : vector<8x1xf32>
    %148 = vector.broadcast %147 : vector<8x1xf32> to vector<8x128xf32>
    %149 = arith.mulf %139, %148 : vector<8x128xf32>
    %150 = vector.broadcast %88 : vector<1x128xf32> to vector<8x128xf32>
    %151 = arith.mulf %149, %150 : vector<8x128xf32>
    %152 = vector.broadcast %90 : vector<1x128xf32> to vector<8x128xf32>
    %153 = arith.addf %151, %152 : vector<8x128xf32>
    %154 = arith.truncf %153 : vector<8x128xf32> to vector<8x128xbf16>
    %cst_73 = arith.constant dense<0.000000e+00> : vector<8x128xf32>
    %155 = tpu.matmul %154, %92, %cst_73 {dimension_numbers = #tpu.dot_dimension_numbers<[1], [0], [0], [1], [0, 0, 1, 1], [], []>} : vector<8x128xbf16>, vector<128x128xbf16>, vector<8x128xf32> -> vector<8x128xf32>
    %156 = vector.broadcast %94 : vector<1x128xf32> to vector<8x128xf32>
    %157 = arith.addf %155, %156 : vector<8x128xf32>
    %cst_74 = arith.constant 0.000000e+00 : f32
    %158 = vector.broadcast %cst_74 : f32 to vector<8x128xf32>
    %159 = arith.maximumf %157, %158 : vector<8x128xf32>
    %160 = arith.truncf %159 : vector<8x128xf32> to vector<8x128xbf16>
    %cst_75 = arith.constant dense<0.000000e+00> : vector<8x128xf32>
    %161 = tpu.matmul %160, %96, %cst_75 {dimension_numbers = #tpu.dot_dimension_numbers<[1], [0], [0], [1], [0, 0, 1, 1], [], []>} : vector<8x128xbf16>, vector<128x128xbf16>, vector<8x128xf32> -> vector<8x128xf32>
    %162 = vector.broadcast %98 : vector<1x128xf32> to vector<8x128xf32>
    %163 = arith.addf %161, %162 : vector<8x128xf32>
    %c0_76 = arith.constant 0 : index
    %c0_77 = arith.constant 0 : index
    %164 = vector.load %arg10[%c0_76, %c0_77] : memref<1x128xf32, #tpu.memory_space<vmem>>, vector<1x128xf32>
    %c0_78 = arith.constant 0 : index
    %c0_79 = arith.constant 0 : index
    %165 = vector.load %arg11[%c0_78, %c0_79] : memref<1x128xf32, #tpu.memory_space<vmem>>, vector<1x128xf32>
    %cst_80 = arith.constant dense<0.000000e+00> : vector<8xf32>
    %166 = vector.multi_reduction <add>, %163, %cst_80 [1] : vector<8x128xf32> to vector<8xf32>
    %167 = vector.shape_cast %166 : vector<8xf32> to vector<8x1xf32>
    %cst_81 = arith.constant 3.125000e-02 : f32
    %168 = vector.broadcast %cst_81 : f32 to vector<8x1xf32>
    %169 = arith.mulf %167, %168 : vector<8x1xf32>
    %170 = vector.broadcast %169 : vector<8x1xf32> to vector<8x128xf32>
    %171 = arith.subf %163, %170 : vector<8x128xf32>
    %cst_82 = arith.constant 0.000000e+00 : f32
    %172 = vector.broadcast %cst_82 : f32 to vector<8x128xf32>
    %173 = arith.select %9, %171, %172 : vector<8x128xi1>, vector<8x128xf32>
    %174 = arith.mulf %173, %173 : vector<8x128xf32>
    %cst_83 = arith.constant dense<0.000000e+00> : vector<8xf32>
    %175 = vector.multi_reduction <add>, %174, %cst_83 [1] : vector<8x128xf32> to vector<8xf32>
    %176 = vector.shape_cast %175 : vector<8xf32> to vector<8x1xf32>
    %cst_84 = arith.constant 3.125000e-02 : f32
    %177 = vector.broadcast %cst_84 : f32 to vector<8x1xf32>
    %178 = arith.mulf %176, %177 : vector<8x1xf32>
    %cst_85 = arith.constant 9.99999974E-6 : f32
    %179 = vector.broadcast %cst_85 : f32 to vector<8x1xf32>
    %180 = arith.addf %178, %179 : vector<8x1xf32>
    %181 = math.rsqrt %180 : vector<8x1xf32>
    %182 = vector.broadcast %181 : vector<8x1xf32> to vector<8x128xf32>
    %183 = arith.mulf %173, %182 : vector<8x128xf32>
    %184 = vector.broadcast %164 : vector<1x128xf32> to vector<8x128xf32>
    %185 = arith.mulf %183, %184 : vector<8x128xf32>
    %186 = vector.broadcast %165 : vector<1x128xf32> to vector<8x128xf32>
    %187 = arith.addf %185, %186 : vector<8x128xf32>
    %188 = arith.truncf %187 : vector<8x128xf32> to vector<8x128xbf16>
    %c0_86 = arith.constant 0 : index
    %c0_87 = arith.constant 0 : index
    %189 = vector.load %arg12[%c0_86, %c0_87] : memref<128x128xbf16, #tpu.memory_space<vmem>>, vector<128x128xbf16>
    %cst_88 = arith.constant dense<0.000000e+00> : vector<8x128xf32>
    %190 = tpu.matmul %188, %189, %cst_88 {dimension_numbers = #tpu.dot_dimension_numbers<[1], [0], [0], [1], [0, 0, 1, 1], [], []>} : vector<8x128xbf16>, vector<128x128xbf16>, vector<8x128xf32> -> vector<8x128xf32>
    %c0_89 = arith.constant 0 : index
    %c0_90 = arith.constant 0 : index
    %191 = vector.load %arg13[%c0_89, %c0_90] : memref<1x128xf32, #tpu.memory_space<vmem>>, vector<1x128xf32>
    %192 = vector.broadcast %191 : vector<1x128xf32> to vector<8x128xf32>
    %193 = arith.addf %190, %192 : vector<8x128xf32>
    %c0_91 = arith.constant 0 : index
    %c0_92 = arith.constant 0 : index
    %194 = vector.load %arg14[%c0_91, %c0_92] : memref<8x128xf32, #tpu.memory_space<vmem>>, vector<8x128xf32>
    tpu.vector_store %arg14[%c0_91, %c0_92], %193 {strides = array<i32>} : memref<8x128xf32, #tpu.memory_space<vmem>>, vector<8x128xf32>,
    return
  }
  func.func @transform_0(%arg0: i32) -> (i32, i32) {
    %c0_i32 = arith.constant 0 : i32
    %c0_i32_0 = arith.constant 0 : i32
    return %arg0, %c0_i32 : i32, i32
  }
  func.func @transform_1(%arg0: i32) -> (i32, i32) {
    %c0_i32 = arith.constant 0 : i32
    %c0_i32_0 = arith.constant 0 : i32
    %c0_i32_1 = arith.constant 0 : i32
    return %c0_i32, %c0_i32_0 : i32, i32
  }
  func.func @transform_2(%arg0: i32) -> (i32, i32) {
    %c0_i32 = arith.constant 0 : i32
    %c0_i32_0 = arith.constant 0 : i32
    %c0_i32_1 = arith.constant 0 : i32
    return %c0_i32, %c0_i32_0 : i32, i32
  }
  func.func @transform_3(%arg0: i32) -> (i32, i32, i32) {
    %c0_i32 = arith.constant 0 : i32
    %c0_i32_0 = arith.constant 0 : i32
    %c0_i32_1 = arith.constant 0 : i32
    %c0_i32_2 = arith.constant 0 : i32
    return %c0_i32, %c0_i32_0, %c0_i32_1 : i32, i32, i32
  }
  func.func @transform_4(%arg0: i32) -> (i32, i32, i32) {
    %c0_i32 = arith.constant 0 : i32
    %c0_i32_0 = arith.constant 0 : i32
    %c0_i32_1 = arith.constant 0 : i32
    %c0_i32_2 = arith.constant 0 : i32
    return %c0_i32, %c0_i32_0, %c0_i32_1 : i32, i32, i32
  }
  func.func @transform_5(%arg0: i32) -> (i32, i32, i32) {
    %c0_i32 = arith.constant 0 : i32
    %c0_i32_0 = arith.constant 0 : i32
    %c0_i32_1 = arith.constant 0 : i32
    %c0_i32_2 = arith.constant 0 : i32
    return %c0_i32, %c0_i32_0, %c0_i32_1 : i32, i32, i32
  }
  func.func @transform_6(%arg0: i32) -> (i32, i32, i32) {
    %c0_i32 = arith.constant 0 : i32
    %c0_i32_0 = arith.constant 0 : i32
    %c0_i32_1 = arith.constant 0 : i32
    %c0_i32_2 = arith.constant 0 : i32
    return %c0_i32, %c0_i32_0, %c0_i32_1 : i32, i32, i32
  }
  func.func @transform_7(%arg0: i32) -> (i32, i32, i32) {
    %c0_i32 = arith.constant 0 : i32
    %c0_i32_0 = arith.constant 0 : i32
    %c0_i32_1 = arith.constant 0 : i32
    %c0_i32_2 = arith.constant 0 : i32
    return %c0_i32, %c0_i32_0, %c0_i32_1 : i32, i32, i32
  }
  func.func @transform_8(%arg0: i32) -> (i32, i32, i32) {
    %c0_i32 = arith.constant 0 : i32
    %c0_i32_0 = arith.constant 0 : i32
    %c0_i32_1 = arith.constant 0 : i32
    %c0_i32_2 = arith.constant 0 : i32
    return %c0_i32, %c0_i32_0, %c0_i32_1 : i32, i32, i32
  }
  func.func @transform_9(%arg0: i32) -> (i32, i32) {
    %c0_i32 = arith.constant 0 : i32
    %c0_i32_0 = arith.constant 0 : i32
    %c0_i32_1 = arith.constant 0 : i32
    return %c0_i32, %c0_i32_0 : i32, i32
  }
  func.func @transform_10(%arg0: i32) -> (i32, i32) {
    %c0_i32 = arith.constant 0 : i32
    %c0_i32_0 = arith.constant 0 : i32
    %c0_i32_1 = arith.constant 0 : i32
    return %c0_i32, %c0_i32_0 : i32, i32
  }
  func.func @transform_11(%arg0: i32) -> (i32, i32) {
    %c0_i32 = arith.constant 0 : i32
    %c0_i32_0 = arith.constant 0 : i32
    %c0_i32_1 = arith.constant 0 : i32
    return %c0_i32, %c0_i32_0 : i32, i32
  }
  func.func @transform_12(%arg0: i32) -> (i32, i32) {
    %c0_i32 = arith.constant 0 : i32
    %c0_i32_0 = arith.constant 0 : i32
    %c0_i32_1 = arith.constant 0 : i32
    return %c0_i32, %c0_i32_0 : i32, i32
  }
  func.func @transform_13(%arg0: i32) -> (i32, i32) {
    %c0_i32 = arith.constant 0 : i32
    %c0_i32_0 = arith.constant 0 : i32
    return %arg0, %c0_i32 : i32, i32
  }
}

</mosaic_0001>

<llo_original>
// kernel: tpu_custom_call.1
$region0: #{tpu_custom_call.1}
  #allocation0 [shape = 'u32[]', space=smem, size = 0x4, offset = 0x4, fixed_abs, tag = 'smem constant byte address 0x4 - core index']
  #allocation1 [shape = 'u32[144,128]{1,0:T(1,128)}', space=vmem, size = 0x12000, scoped, tag = 'internal scratch']
  %s0 = inlined_call_operand.hbm [shape: f32[8,128], index: 0, kind: input, shape index: {}]
  %s1 = inlined_call_operand.hbm [shape: bf16[128,128], index: 1, kind: input, shape index: {}]
  %s2 = inlined_call_operand.vmem [shape: f32[1,128], index: 2, kind: input, shape index: {}]
  %s3 = inlined_call_operand.vmem [shape: f32[2,1,128], index: 3, kind: input, shape index: {}]
  %s4 = inlined_call_operand.vmem [shape: f32[2,1,128], index: 4, kind: input, shape index: {}]
  %s5 = inlined_call_operand.hbm [shape: bf16[2,128,128], index: 5, kind: input, shape index: {}]
  %s6 = inlined_call_operand.vmem [shape: f32[2,1,128], index: 6, kind: input, shape index: {}]
  %s7 = inlined_call_operand.hbm [shape: bf16[2,128,128], index: 7, kind: input, shape index: {}]
  %s8 = inlined_call_operand.vmem [shape: f32[2,1,128], index: 8, kind: input, shape index: {}]
  %s9 = inlined_call_operand.vmem [shape: f32[1,128], index: 9, kind: input, shape index: {}]
  %s10 = inlined_call_operand.vmem [shape: f32[1,128], index: 10, kind: input, shape index: {}]
  %s11 = inlined_call_operand.hbm [shape: bf16[128,128], index: 11, kind: input, shape index: {}]
  %s12 = inlined_call_operand.vmem [shape: f32[1,128], index: 12, kind: input, shape index: {}]
  %s13 = inlined_call_operand.hbm [shape: f32[8,128], index: 13, kind: output, shape index: {}]
  %s14 = sld [smem:[#allocation0]]
  $region82: #{tpu_custom_call.1} parent=0
    _
  %s16 = ssub.s32 1, %s14
  %s17 = scalar_select 0, %s16, %s14
  $region1: #{tpu_custom_call.1} parent=0
    #allocation2 [shape = 'u8[4096]{0}', space=vmem, size = 0x1000, scoped, tag = 'input window, operand 0, single buffered']
    #allocation3 [shape = 's32[1]{0}', space=sflag, size = 0x4, scoped, tag = 'scoped memory for tpu_custom_call.1']
    #allocation4 [shape = 's32[1]{0}', space=sflag, size = 0x4, scoped, tag = 'scoped memory for tpu_custom_call.1']
    #allocation5 [shape = 'u8[32768]{0}', space=vmem, size = 0x8000, scoped, tag = 'input window, operand 1, single buffered']
    #allocation6 [shape = 's32[1]{0}', space=sflag, size = 0x4, scoped, tag = 'scoped memory for tpu_custom_call.1']
    #allocation7 [shape = 'u8[65536]{0}', space=vmem, size = 0x10000, scoped, tag = 'input window, operand 5, single buffered']
    #allocation8 [shape = 'u8[65536]{0}', space=vmem, size = 0x10000, scoped, tag = 'input window, operand 7, single buffered']
    #allocation9 [shape = 's32[1]{0}', space=sflag, size = 0x4, scoped, tag = 'scoped memory for tpu_custom_call.1']
    #allocation10 [shape = 'u8[32768]{0}', space=vmem, size = 0x8000, scoped, tag = 'input window, operand 11, single buffered']
    #allocation11 [shape = 'u8[4096]{0}', space=vmem, size = 0x1000, scoped, tag = 'output window, operand 0, single buffered']
    %18 = vsyncpa [#allocation3], 0
    %19 = vsyncpa [#allocation6], 0
    %20 = vsyncpa [#allocation9], 0
    %21 = vsyncpa [#allocation4], 0
    // Predicated region
    $region2: #{tpu_custom_call.1} parent=1 // pred_check
      _
    $region3: #{tpu_custom_call.1} parent=1 // pred_check_branch
      %23 = sbr.rel (0) target = $region5
    $region4: #{tpu_custom_call.1} parent=1 // pred_region
      %s25 = ssub.s32 128, 128
      %26 = vsyncadd [#allocation3], %s25
      %s28 = sshll.u32 [#allocation2], 4
      %s29 = int_to_ptr.vmem [resolvable:$true] %s28
      %31 = dma.hbm_to_vmem [thread:$0]  %s0, 128, %s29, [#allocation3]
    $region5: #{tpu_custom_call.1} parent=1 // pred_fallthru
      _
    // Predicated region
    $region6: #{tpu_custom_call.1} parent=1 // pred_check
      _
    $region7: #{tpu_custom_call.1} parent=1 // pred_check_branch
      %33 = sbr.rel (0) target = $region9
    $region8: #{tpu_custom_call.1} parent=1 // pred_region
      %s35 = ssub.s32 1024, 1024
      %36 = vsyncadd [#allocation6], %s35
      %s37 = sshll.u32 [#allocation5], 4
      %s38 = int_to_ptr.vmem [resolvable:$true] %s37
      %43 = dma.hbm_to_vmem [thread:$0]  %s1, 1024, %s38, [#allocation6], 64, 64, 4
    $region9: #{tpu_custom_call.1} parent=1 // pred_fallthru
      _
    // Predicated region
    $region10: #{tpu_custom_call.1} parent=1 // pred_check
      _
    $region11: #{tpu_custom_call.1} parent=1 // pred_check_branch
      %45 = sbr.rel (0) target = $region13
    $region12: #{tpu_custom_call.1} parent=1 // pred_region
      _
    $region13: #{tpu_custom_call.1} parent=1 // pred_fallthru
      _
    // Predicated region
    $region14: #{tpu_custom_call.1} parent=1 // pred_check
      _
    $region15: #{tpu_custom_call.1} parent=1 // pred_check_branch
      %47 = sbr.rel (0) target = $region17
    $region16: #{tpu_custom_call.1} parent=1 // pred_region
      _
    $region17: #{tpu_custom_call.1} parent=1 // pred_fallthru
      _
    // Predicated region
    $region18: #{tpu_custom_call.1} parent=1 // pred_check
      _
    $region19: #{tpu_custom_call.1} parent=1 // pred_check_branch
      %49 = sbr.rel (0) target = $region21
    $region20: #{tpu_custom_call.1} parent=1 // pred_region
      _
    $region21: #{tpu_custom_call.1} parent=1 // pred_fallthru
      _
    // Predicated region
    $region22: #{tpu_custom_call.1} parent=1 // pred_check
      _
    $region23: #{tpu_custom_call.1} parent=1 // pred_check_branch
      %51 = sbr.rel (0) target = $region25
    $region24: #{tpu_custom_call.1} parent=1 // pred_region
      %s53 = ssub.s32 2048, 2048
      %54 = vsyncadd [#allocation6], %s53
      %s55 = sshll.u32 [#allocation7], 4
      %s56 = int_to_ptr.vmem [resolvable:$true] %s55
      %61 = dma.hbm_to_vmem [thread:$0]  %s5, 2048, %s56, [#allocation6], 64, 64, 4
    $region25: #{tpu_custom_call.1} parent=1 // pred_fallthru
      _
    // Predicated region
    $region26: #{tpu_custom_call.1} parent=1 // pred_check
      _
    $region27: #{tpu_custom_call.1} parent=1 // pred_check_branch
      %63 = sbr.rel (0) target = $region29
    $region28: #{tpu_custom_call.1} parent=1 // pred_region
      _
    $region29: #{tpu_custom_call.1} parent=1 // pred_fallthru
      _
    // Predicated region
    $region30: #{tpu_custom_call.1} parent=1 // pred_check
      _
    $region31: #{tpu_custom_call.1} parent=1 // pred_check_branch
      %65 = sbr.rel (0) target = $region33
    $region32: #{tpu_custom_call.1} parent=1 // pred_region
      %s67 = ssub.s32 2048, 2048
      %68 = vsyncadd [#allocation9], %s67
      %s69 = sshll.u32 [#allocation8], 4
      %s70 = int_to_ptr.vmem [resolvable:$true] %s69
      %75 = dma.hbm_to_vmem [thread:$0]  %s7, 2048, %s70, [#allocation9], 64, 64, 4
    $region33: #{tpu_custom_call.1} parent=1 // pred_fallthru
      _
    // Predicated region
    $region34: #{tpu_custom_call.1} parent=1 // pred_check
      _
    $region35: #{tpu_custom_call.1} parent=1 // pred_check_branch
      %77 = sbr.rel (0) target = $region37
    $region36: #{tpu_custom_call.1} parent=1 // pred_region
      _
    $region37: #{tpu_custom_call.1} parent=1 // pred_fallthru
      _
    // Predicated region
    $region38: #{tpu_custom_call.1} parent=1 // pred_check
      _
    $region39: #{tpu_custom_call.1} parent=1 // pred_check_branch
      %79 = sbr.rel (0) target = $region41
    $region40: #{tpu_custom_call.1} parent=1 // pred_region
      _
    $region41: #{tpu_custom_call.1} parent=1 // pred_fallthru
      _
    // Predicated region
    $region42: #{tpu_custom_call.1} parent=1 // pred_check
      _
    $region43: #{tpu_custom_call.1} parent=1 // pred_check_branch
      %81 = sbr.rel (0) target = $region45
    $region44: #{tpu_custom_call.1} parent=1 // pred_region
      _
    $region45: #{tpu_custom_call.1} parent=1 // pred_fallthru
      _
    // Predicated region
    $region46: #{tpu_custom_call.1} parent=1 // pred_check
      _
    $region47: #{tpu_custom_call.1} parent=1 // pred_check_branch
      %83 = sbr.rel (0) target = $region49
    $region48: #{tpu_custom_call.1} parent=1 // pred_region
      %s85 = ssub.s32 1024, 1024
      %86 = vsyncadd [#allocation9], %s85
      %s87 = sshll.u32 [#allocation10], 4
      %s88 = int_to_ptr.vmem [resolvable:$true] %s87
      %93 = dma.hbm_to_vmem [thread:$0]  %s11, 1024, %s88, [#allocation9], 64, 64, 4
    $region49: #{tpu_custom_call.1} parent=1 // pred_fallthru
      _
    // Predicated region
    $region50: #{tpu_custom_call.1} parent=1 // pred_check
      _
    $region51: #{tpu_custom_call.1} parent=1 // pred_check_branch
      %95 = sbr.rel (0) target = $region53
    $region52: #{tpu_custom_call.1} parent=1 // pred_region
      _
    $region53: #{tpu_custom_call.1} parent=1 // pred_fallthru
      _
    // Predicated region
    $region54: #{tpu_custom_call.1} parent=1 // pred_check
      _
    $region55: #{tpu_custom_call.1} parent=1 // pred_check_branch
      %97 = sbr.rel (0) target = $region57
    $region56: #{tpu_custom_call.1} parent=1 // pred_region
      %98 = dma.done [#allocation3], 128
    $region57: #{tpu_custom_call.1} parent=1 // pred_fallthru
      _
    // Predicated region
    $region58: #{tpu_custom_call.1} parent=1 // pred_check
      _
    $region59: #{tpu_custom_call.1} parent=1 // pred_check_branch
      %100 = sbr.rel (0) target = $region61
    $region60: #{tpu_custom_call.1} parent=1 // pred_region
      %101 = dma.done [#allocation6], 1024
    $region61: #{tpu_custom_call.1} parent=1 // pred_fallthru
      _
    // Predicated region
    $region62: #{tpu_custom_call.1} parent=1 // pred_check
      _
    $region63: #{tpu_custom_call.1} parent=1 // pred_check_branch
      %103 = sbr.rel (0) target = $region65
    $region64: #{tpu_custom_call.1} parent=1 // pred_region
      %104 = dma.done [#allocation6], 2048
    $region65: #{tpu_custom_call.1} parent=1 // pred_fallthru
      _
    // Predicated region
    $region66: #{tpu_custom_call.1} parent=1 // pred_check
      _
    $region67: #{tpu_custom_call.1} parent=1 // pred_check_branch
      %106 = sbr.rel (0) target = $region69
    $region68: #{tpu_custom_call.1} parent=1 // pred_region
      %107 = dma.done [#allocation9], 2048
    $region69: #{tpu_custom_call.1} parent=1 // pred_fallthru
      _
    // Predicated region
    $region70: #{tpu_custom_call.1} parent=1 // pred_check
      _
    $region71: #{tpu_custom_call.1} parent=1 // pred_check_branch
      %109 = sbr.rel (0) target = $region73
    $region72: #{tpu_custom_call.1} parent=1 // pred_region
      %110 = dma.done [#allocation9], 1024
    $region73: #{tpu_custom_call.1} parent=1 // pred_fallthru
      _
    %v112 = vld [vmem:[#allocation2] sm:$0xff]
    %v113 = vpack.c.bf16 %v112, %v112
    %v114 = vld [vmem:[#allocation5] sm:$0xf]
    %v115 = vld [vmem:[#allocation5 + $0x4] sm:$0xf]
    %v116 = vld [vmem:[#allocation5 + $0x8] sm:$0xf]
    %v117 = vld [vmem:[#allocation5 + $0xc] sm:$0xf]
    %v118 = vld [vmem:[#allocation5 + $0x10] sm:$0xf]
    %v119 = vld [vmem:[#allocation5 + $0x14] sm:$0xf]
    %v120 = vld [vmem:[#allocation5 + $0x18] sm:$0xf]
    %v121 = vld [vmem:[#allocation5 + $0x1c] sm:$0xf]
    %v122 = vld [vmem:[#allocation5 + $0x20] sm:$0xf]
    %v123 = vld [vmem:[#allocation5 + $0x24] sm:$0xf]
    %v124 = vld [vmem:[#allocation5 + $0x28] sm:$0xf]
    %v125 = vld [vmem:[#allocation5 + $0x2c] sm:$0xf]
    %v126 = vld [vmem:[#allocation5 + $0x30] sm:$0xf]
    %v127 = vld [vmem:[#allocation5 + $0x34] sm:$0xf]
    %v128 = vld [vmem:[#allocation5 + $0x38] sm:$0xf]
    %v129 = vld [vmem:[#allocation5 + $0x3c] sm:$0xf]
    %v130 = vld [vmem:[%s2] sm:$0x1]
    %v132 = vlaneseq
    %v133 = vshrl.u32 %v132, 7
    %v134 = vsub.s32 0, %v133
    %v135 = vrot.slane %v130, %v134
    %v153 = vunpack.c.l.b16 %v114
    %v154 = vunpack.c.l.b16 %v115
    %v155 = vunpack.c.l.b16 %v116
    %v156 = vunpack.c.l.b16 %v117
    %v157 = vunpack.c.l.b16 %v118
    %v158 = vunpack.c.l.b16 %v119
    %v159 = vunpack.c.l.b16 %v120
    %v160 = vunpack.c.l.b16 %v121
    %v161 = vunpack.c.l.b16 %v122
    %v162 = vunpack.c.l.b16 %v123
    %v163 = vunpack.c.l.b16 %v124
    %v164 = vunpack.c.l.b16 %v125
    %v165 = vunpack.c.l.b16 %v126
    %v166 = vunpack.c.l.b16 %v127
    %v167 = vunpack.c.l.b16 %v128
    %v168 = vunpack.c.l.b16 %v129
    %v169 = vpack.c.b16 %v154, %v153
    %v170 = vpack.c.b16 %v156, %v155
    %v171 = vpack.c.b16 %v158, %v157
    %v172 = vpack.c.b16 %v160, %v159
    %v173 = vpack.c.b16 %v162, %v161
    %v174 = vpack.c.b16 %v164, %v163
    %v175 = vpack.c.b16 %v166, %v165
    %v176 = vpack.c.b16 %v168, %v167
    %185 = vmatprep.subr.bf16.mxu0 0
    %186 = vmatpush1.bf16.msra.mxu0 %v169
    %187 = vmatprep.subr.bf16.mxu0 0
    %188 = vmatpush1.bf16.msra.mxu0 %v170
    %189 = vmatprep.subr.bf16.mxu0 0
    %190 = vmatpush1.bf16.msra.mxu0 %v171
    %191 = vmatprep.subr.bf16.mxu0 0
    %192 = vmatpush1.bf16.msra.mxu0 %v172
    %193 = vmatprep.subr.bf16.mxu0 0
    %194 = vmatpush1.bf16.msra.mxu0 %v173
    %195 = vmatprep.subr.bf16.mxu0 0
    %196 = vmatpush1.bf16.msra.mxu0 %v174
    %197 = vmatprep.subr.bf16.mxu0 0
    %198 = vmatpush1.bf16.msra.mxu0 %v175
    %199 = vmatprep.subr.bf16.mxu0 0
    %200 = vmatpush1.bf16.msra.mxu0 %v176
    %201 = vmatprep.subr.bf16.mxu0 0
    %202 = vmatpush1.bf16.msra.mxu0 0
    %203 = vmatprep.subr.bf16.mxu0 0
    %204 = vmatpush1.bf16.msra.mxu0 0
    %205 = vmatprep.subr.bf16.mxu0 0
    %206 = vmatpush1.bf16.msra.mxu0 0
    %207 = vmatprep.subr.bf16.mxu0 0
    %208 = vmatpush1.bf16.msra.mxu0 0
    %209 = vmatprep.subr.bf16.mxu0 0
    %210 = vmatpush1.bf16.msra.mxu0 0
    %211 = vmatprep.subr.bf16.mxu0 0
    %212 = vmatpush1.bf16.msra.mxu0 0
    %213 = vmatprep.subr.bf16.mxu0 0
    %214 = vmatpush1.bf16.msra.mxu0 0
    %215 = vmatprep.subr.bf16.mxu0 0
    %216 = vmatpush1.bf16.msra.mxu0 0
    %217 = vmatprep.mubr.bf16.mxu0 0
    %218 = vmatmul.mubr.bf16.gmra.mrb[0].mxu0 %v113
    %v219 = vpop.f32.mrb[0].mxu0
    %v220 = vadd.f32 %v135, %v219
    %v221 = vpop.f32.mrb[0].mxu0
    %v222 = vpop.f32.mrb[0].mxu0
    %v223 = vpop.f32.mrb[0].mxu0
    %224 = vdwg.mxu0
    %v225 = vlaneseq
    %v226 = vand.u32 %v225, 127
    %vm227 = vcmp.lt.s32.totalorder %v226, 32
    %v228 = vld [vmem:[%s3] sm:$0x1]
    %v229 = vld [vmem:[%s4] sm:$0x1]
    %v230 = vld [vmem:[#allocation7] sm:$0xf]
    %v231 = vld [vmem:[#allocation7 + $0x4] sm:$0xf]
    %v232 = vld [vmem:[#allocation7 + $0x8] sm:$0xf]
    %v233 = vld [vmem:[#allocation7 + $0xc] sm:$0xf]
    %v234 = vld [vmem:[#allocation7 + $0x10] sm:$0xf]
    %v235 = vld [vmem:[#allocation7 + $0x14] sm:$0xf]
    %v236 = vld [vmem:[#allocation7 + $0x18] sm:$0xf]
    %v237 = vld [vmem:[#allocation7 + $0x1c] sm:$0xf]
    %v238 = vld [vmem:[#allocation7 + $0x20] sm:$0xf]
    %v239 = vld [vmem:[#allocation7 + $0x24] sm:$0xf]
    %v240 = vld [vmem:[#allocation7 + $0x28] sm:$0xf]
    %v241 = vld [vmem:[#allocation7 + $0x2c] sm:$0xf]
    %v242 = vld [vmem:[#allocation7 + $0x30] sm:$0xf]
    %v243 = vld [vmem:[#allocation7 + $0x34] sm:$0xf]
    %v244 = vld [vmem:[#allocation7 + $0x38] sm:$0xf]
    %v245 = vld [vmem:[#allocation7 + $0x3c] sm:$0xf]
    %v246 = vld [vmem:[%s6] sm:$0x1]
    %v247 = vld [vmem:[#allocation8] sm:$0xf]
    %v248 = vld [vmem:[#allocation8 + $0x4] sm:$0xf]
    %v249 = vld [vmem:[#allocation8 + $0x8] sm:$0xf]
    %v250 = vld [vmem:[#allocation8 + $0xc] sm:$0xf]
    %v251 = vld [vmem:[#allocation8 + $0x10] sm:$0xf]
    %v252 = vld [vmem:[#allocation8 + $0x14] sm:$0xf]
    %v253 = vld [vmem:[#allocation8 + $0x18] sm:$0xf]
    %v254 = vld [vmem:[#allocation8 + $0x1c] sm:$0xf]
    %v255 = vld [vmem:[#allocation8 + $0x20] sm:$0xf]
    %v256 = vld [vmem:[#allocation8 + $0x24] sm:$0xf]
    %v257 = vld [vmem:[#allocation8 + $0x28] sm:$0xf]
    %v258 = vld [vmem:[#allocation8 + $0x2c] sm:$0xf]
    %v259 = vld [vmem:[#allocation8 + $0x30] sm:$0xf]
    %v260 = vld [vmem:[#allocation8 + $0x34] sm:$0xf]
    %v261 = vld [vmem:[#allocation8 + $0x38] sm:$0xf]
    %v262 = vld [vmem:[#allocation8 + $0x3c] sm:$0xf]
    %v263 = vld [vmem:[%s8] sm:$0x1]
    %264 = vadd.xlane.f32.xlu0 %v220
    %v265 = vpop.xlane.xlu0 %264
    %v266 = vmul.f32 %v265, 0.03125
    %v267 = vsub.f32 %v220, %v266
    %v268 = vsel %vm227, %v267, 0.0
    %v269 = vmul.f32 %v268, %v268
    %270 = vadd.xlane.f32.xlu0 %v269
    %v271 = vpop.xlane.xlu0 %270
    %v272 = vmul.f32 %v271, 0.03125
    %v273 = vadd.f32 %v272, 1e-05
    %v274 = vrsqrt.pop %v273
    %v275 = vmul.f32 %v268, %v274
    %v277 = vlaneseq
    %v278 = vshrl.u32 %v277, 7
    %v279 = vsub.s32 0, %v278
    %v280 = vrot.slane %v228, %v279
    %v282 = vmul.f32 %v275, %v280
    %v284 = vlaneseq
    %v285 = vshrl.u32 %v284, 7
    %v286 = vsub.s32 0, %v285
    %v287 = vrot.slane %v229, %v286
    %v289 = vadd.f32 %v282, %v287
    %v290 = vpack.c.bf16 %v289, %v289
    %v292 = vlaneseq
    %v293 = vshrl.u32 %v292, 7
    %v294 = vsub.s32 0, %v293
    %v295 = vrot.slane %v246, %v294
    %v313 = vunpack.c.l.b16 %v230
    %v314 = vunpack.c.l.b16 %v231
    %v315 = vunpack.c.l.b16 %v232
    %v316 = vunpack.c.l.b16 %v233
    %v317 = vunpack.c.l.b16 %v234
    %v318 = vunpack.c.l.b16 %v235
    %v319 = vunpack.c.l.b16 %v236
    %v320 = vunpack.c.l.b16 %v237
    %v321 = vunpack.c.l.b16 %v238
    %v322 = vunpack.c.l.b16 %v239
    %v323 = vunpack.c.l.b16 %v240
    %v324 = vunpack.c.l.b16 %v241
    %v325 = vunpack.c.l.b16 %v242
    %v326 = vunpack.c.l.b16 %v243
    %v327 = vunpack.c.l.b16 %v244
    %v328 = vunpack.c.l.b16 %v245
    %v329 = vpack.c.b16 %v314, %v313
    %v330 = vpack.c.b16 %v316, %v315
    %v331 = vpack.c.b16 %v318, %v317
    %v332 = vpack.c.b16 %v320, %v319
    %v333 = vpack.c.b16 %v322, %v321
    %v334 = vpack.c.b16 %v324, %v323
    %v335 = vpack.c.b16 %v326, %v325
    %v336 = vpack.c.b16 %v328, %v327
    %345 = vmatprep.subr.bf16.mxu0 0
    %346 = vmatpush1.bf16.msra.mxu0 %v329
    %347 = vmatprep.subr.bf16.mxu0 0
    %348 = vmatpush1.bf16.msra.mxu0 %v330
    %349 = vmatprep.subr.bf16.mxu0 0
    %350 = vmatpush1.bf16.msra.mxu0 %v331
    %351 = vmatprep.subr.bf16.mxu0 0
    %352 = vmatpush1.bf16.msra.mxu0 %v332
    %353 = vmatprep.subr.bf16.mxu0 0
    %354 = vmatpush1.bf16.msra.mxu0 %v333
    %355 = vmatprep.subr.bf16.mxu0 0
    %356 = vmatpush1.bf16.msra.mxu0 %v334
    %357 = vmatprep.subr.bf16.mxu0 0
    %358 = vmatpush1.bf16.msra.mxu0 %v335
    %359 = vmatprep.subr.bf16.mxu0 0
    %360 = vmatpush1.bf16.msra.mxu0 %v336
    %361 = vmatprep.subr.bf16.mxu0 0
    %362 = vmatpush1.bf16.msra.mxu0 0
    %363 = vmatprep.subr.bf16.mxu0 0
    %364 = vmatpush1.bf16.msra.mxu0 0
    %365 = vmatprep.subr.bf16.mxu0 0
    %366 = vmatpush1.bf16.msra.mxu0 0
    %367 = vmatprep.subr.bf16.mxu0 0
    %368 = vmatpush1.bf16.msra.mxu0 0
    %369 = vmatprep.subr.bf16.mxu0 0
    %370 = vmatpush1.bf16.msra.mxu0 0
    %371 = vmatprep.subr.bf16.mxu0 0
    %372 = vmatpush1.bf16.msra.mxu0 0
    %373 = vmatprep.subr.bf16.mxu0 0
    %374 = vmatpush1.bf16.msra.mxu0 0
    %375 = vmatprep.subr.bf16.mxu0 0
    %376 = vmatpush1.bf16.msra.mxu0 0
    %377 = vmatprep.mubr.bf16.mxu0 0
    %378 = vmatmul.mubr.bf16.gmra.mrb[0].mxu0 %v290
    %v379 = vpop.f32.mrb[0].mxu0
    %v380 = vadd.f32 %v295, %v379
    %v381 = vpop.f32.mrb[0].mxu0
    %v382 = vpop.f32.mrb[0].mxu0
    %v383 = vpop.f32.mrb[0].mxu0
    %384 = vdwg.mxu0
    %v385 = vmax.f32 %v380, 0.0
    %v386 = vpack.c.bf16 %v385, %v385
    %v388 = vlaneseq
    %v389 = vshrl.u32 %v388, 7
    %v390 = vsub.s32 0, %v389
    %v391 = vrot.slane %v263, %v390
    %v409 = vunpack.c.l.b16 %v247
    %v410 = vunpack.c.l.b16 %v248
    %v411 = vunpack.c.l.b16 %v249
    %v412 = vunpack.c.l.b16 %v250
    %v413 = vunpack.c.l.b16 %v251
    %v414 = vunpack.c.l.b16 %v252
    %v415 = vunpack.c.l.b16 %v253
    %v416 = vunpack.c.l.b16 %v254
    %v417 = vunpack.c.l.b16 %v255
    %v418 = vunpack.c.l.b16 %v256
    %v419 = vunpack.c.l.b16 %v257
    %v420 = vunpack.c.l.b16 %v258
    %v421 = vunpack.c.l.b16 %v259
    %v422 = vunpack.c.l.b16 %v260
    %v423 = vunpack.c.l.b16 %v261
    %v424 = vunpack.c.l.b16 %v262
    %v425 = vpack.c.b16 %v410, %v409
    %v426 = vpack.c.b16 %v412, %v411
    %v427 = vpack.c.b16 %v414, %v413
    %v428 = vpack.c.b16 %v416, %v415
    %v429 = vpack.c.b16 %v418, %v417
    %v430 = vpack.c.b16 %v420, %v419
    %v431 = vpack.c.b16 %v422, %v421
    %v432 = vpack.c.b16 %v424, %v423
    %441 = vmatprep.subr.bf16.mxu0 0
    %442 = vmatpush1.bf16.msra.mxu0 %v425
    %443 = vmatprep.subr.bf16.mxu0 0
    %444 = vmatpush1.bf16.msra.mxu0 %v426
    %445 = vmatprep.subr.bf16.mxu0 0
    %446 = vmatpush1.bf16.msra.mxu0 %v427
    %447 = vmatprep.subr.bf16.mxu0 0
    %448 = vmatpush1.bf16.msra.mxu0 %v428
    %449 = vmatprep.subr.bf16.mxu0 0
    %450 = vmatpush1.bf16.msra.mxu0 %v429
    %451 = vmatprep.subr.bf16.mxu0 0
    %452 = vmatpush1.bf16.msra.mxu0 %v430
    %453 = vmatprep.subr.bf16.mxu0 0
    %454 = vmatpush1.bf16.msra.mxu0 %v431
    %455 = vmatprep.subr.bf16.mxu0 0
    %456 = vmatpush1.bf16.msra.mxu0 %v432
    %457 = vmatprep.subr.bf16.mxu0 0
    %458 = vmatpush1.bf16.msra.mxu0 0
    %459 = vmatprep.subr.bf16.mxu0 0
    %460 = vmatpush1.bf16.msra.mxu0 0
    %461 = vmatprep.subr.bf16.mxu0 0
    %462 = vmatpush1.bf16.msra.mxu0 0
    %463 = vmatprep.subr.bf16.mxu0 0
    %464 = vmatpush1.bf16.msra.mxu0 0
    %465 = vmatprep.subr.bf16.mxu0 0
    %466 = vmatpush1.bf16.msra.mxu0 0
    %467 = vmatprep.subr.bf16.mxu0 0
    %468 = vmatpush1.bf16.msra.mxu0 0
    %469 = vmatprep.subr.bf16.mxu0 0
    %470 = vmatpush1.bf16.msra.mxu0 0
    %471 = vmatprep.subr.bf16.mxu0 0
    %472 = vmatpush1.bf16.msra.mxu0 0
    %473 = vmatprep.mubr.bf16.mxu0 0
    %474 = vmatmul.mubr.bf16.gmra.mrb[0].mxu0 %v386
    %v475 = vpop.f32.mrb[0].mxu0
    %v476 = vadd.f32 %v391, %v475
    %v477 = vpop.f32.mrb[0].mxu0
    %v478 = vpop.f32.mrb[0].mxu0
    %v479 = vpop.f32.mrb[0].mxu0
    %480 = vdwg.mxu0
    %v481 = vadd.f32 %v220, %v476
    %482 = vadd.xlane.f32.xlu0 %v481
    %v483 = vpop.xlane.xlu0 %482
    %v484 = vmul.f32 %v483, 0.03125
    %v485 = vsub.f32 %v481, %v484
    %v486 = vsel %vm227, %v485, 0.0
    %v487 = vmul.f32 %v486, %v486
    %488 = vadd.xlane.f32.xlu0 %v487
    %v489 = vpop.xlane.xlu0 %488
    %v490 = vmul.f32 %v489, 0.03125
    %v491 = vadd.f32 %v490, 1e-05
    %v492 = vrsqrt.pop %v491
    %v493 = vmul.f32 %v486, %v492
    %v494 = vmul.f32 %v493, %v280
    %v495 = vadd.f32 %v494, %v287
    %v496 = vpack.c.bf16 %v495, %v495
    %497 = vmatprep.subr.bf16.mxu0 0
    %498 = vmatpush1.bf16.msra.mxu0 %v329
    %499 = vmatprep.subr.bf16.mxu0 0
    %500 = vmatpush1.bf16.msra.mxu0 %v330
    %501 = vmatprep.subr.bf16.mxu0 0
    %502 = vmatpush1.bf16.msra.mxu0 %v331
    %503 = vmatprep.subr.bf16.mxu0 0
    %504 = vmatpush1.bf16.msra.mxu0 %v332
    %505 = vmatprep.subr.bf16.mxu0 0
    %506 = vmatpush1.bf16.msra.mxu0 %v333
    %507 = vmatprep.subr.bf16.mxu0 0
    %508 = vmatpush1.bf16.msra.mxu0 %v334
    %509 = vmatprep.subr.bf16.mxu0 0
    %510 = vmatpush1.bf16.msra.mxu0 %v335
    %511 = vmatprep.subr.bf16.mxu0 0
    %512 = vmatpush1.bf16.msra.mxu0 %v336
    %513 = vmatprep.subr.bf16.mxu0 0
    %514 = vmatpush1.bf16.msra.mxu0 0
    %515 = vmatprep.subr.bf16.mxu0 0
    %516 = vmatpush1.bf16.msra.mxu0 0
    %517 = vmatprep.subr.bf16.mxu0 0
    %518 = vmatpush1.bf16.msra.mxu0 0
    %519 = vmatprep.subr.bf16.mxu0 0
    %520 = vmatpush1.bf16.msra.mxu0 0
    %521 = vmatprep.subr.bf16.mxu0 0
    %522 = vmatpush1.bf16.msra.mxu0 0
    %523 = vmatprep.subr.bf16.mxu0 0
    %524 = vmatpush1.bf16.msra.mxu0 0
    %525 = vmatprep.subr.bf16.mxu0 0
    %526 = vmatpush1.bf16.msra.mxu0 0
    %527 = vmatprep.subr.bf16.mxu0 0
    %528 = vmatpush1.bf16.msra.mxu0 0
    %529 = vmatprep.mubr.bf16.mxu0 0
    %530 = vmatmul.mubr.bf16.gmra.mrb[0].mxu0 %v496
    %v531 = vpop.f32.mrb[0].mxu0
    %v532 = vadd.f32 %v295, %v531
    %v533 = vpop.f32.mrb[0].mxu0
    %v534 = vpop.f32.mrb[0].mxu0
    %v535 = vpop.f32.mrb[0].mxu0
    %536 = vdwg.mxu0
    %v537 = vmax.f32 %v532, 0.0
    %v538 = vpack.c.bf16 %v537, %v537
    %539 = vmatprep.subr.bf16.mxu0 0
    %540 = vmatpush1.bf16.msra.mxu0 %v425
    %541 = vmatprep.subr.bf16.mxu0 0
    %542 = vmatpush1.bf16.msra.mxu0 %v426
    %543 = vmatprep.subr.bf16.mxu0 0
    %544 = vmatpush1.bf16.msra.mxu0 %v427
    %545 = vmatprep.subr.bf16.mxu0 0
    %546 = vmatpush1.bf16.msra.mxu0 %v428
    %547 = vmatprep.subr.bf16.mxu0 0
    %548 = vmatpush1.bf16.msra.mxu0 %v429
    %549 = vmatprep.subr.bf16.mxu0 0
    %550 = vmatpush1.bf16.msra.mxu0 %v430
    %551 = vmatprep.subr.bf16.mxu0 0
    %552 = vmatpush1.bf16.msra.mxu0 %v431
    %553 = vmatprep.subr.bf16.mxu0 0
    %554 = vmatpush1.bf16.msra.mxu0 %v432
    %555 = vmatprep.subr.bf16.mxu0 0
    %556 = vmatpush1.bf16.msra.mxu0 0
    %557 = vmatprep.subr.bf16.mxu0 0
    %558 = vmatpush1.bf16.msra.mxu0 0
    %559 = vmatprep.subr.bf16.mxu0 0
    %560 = vmatpush1.bf16.msra.mxu0 0
    %561 = vmatprep.subr.bf16.mxu0 0
    %562 = vmatpush1.bf16.msra.mxu0 0
    %563 = vmatprep.subr.bf16.mxu0 0
    %564 = vmatpush1.bf16.msra.mxu0 0
    %565 = vmatprep.subr.bf16.mxu0 0
    %566 = vmatpush1.bf16.msra.mxu0 0
    %567 = vmatprep.subr.bf16.mxu0 0
    %568 = vmatpush1.bf16.msra.mxu0 0
    %569 = vmatprep.subr.bf16.mxu0 0
    %570 = vmatpush1.bf16.msra.mxu0 0
    %571 = vmatprep.mubr.bf16.mxu0 0
    %572 = vmatmul.mubr.bf16.gmra.mrb[0].mxu0 %v538
    %v573 = vpop.f32.mrb[0].mxu0
    %v574 = vadd.f32 %v391, %v573
    %v575 = vpop.f32.mrb[0].mxu0
    %v576 = vpop.f32.mrb[0].mxu0
    %v577 = vpop.f32.mrb[0].mxu0
    %578 = vdwg.mxu0
    %s579 = scalar_lea.vmem %s3, 1
    %v580 = vld [vmem:[%s579] sm:$0x1]
    %s581 = scalar_lea.vmem %s4, 1
    %v582 = vld [vmem:[%s581] sm:$0x1]
    %s583 = scalar_lea.vmem [#allocation7], 64
    %v584 = vld [vmem:[%s583] sm:$0xf]
    %v585 = vld [vmem:[%s583 + $0x4] sm:$0xf]
    %v586 = vld [vmem:[%s583 + $0x8] sm:$0xf]
    %v587 = vld [vmem:[%s583 + $0xc] sm:$0xf]
    %v588 = vld [vmem:[%s583 + $0x10] sm:$0xf]
    %v589 = vld [vmem:[%s583 + $0x14] sm:$0xf]
    %v590 = vld [vmem:[%s583 + $0x18] sm:$0xf]
    %v591 = vld [vmem:[%s583 + $0x1c] sm:$0xf]
    %v592 = vld [vmem:[%s583 + $0x20] sm:$0xf]
    %v593 = vld [vmem:[%s583 + $0x24] sm:$0xf]
    %v594 = vld [vmem:[%s583 + $0x28] sm:$0xf]
    %v595 = vld [vmem:[%s583 + $0x2c] sm:$0xf]
    %v596 = vld [vmem:[%s583 + $0x30] sm:$0xf]
    %v597 = vld [vmem:[%s583 + $0x34] sm:$0xf]
    %v598 = vld [vmem:[%s583 + $0x38] sm:$0xf]
    %v599 = vld [vmem:[%s583 + $0x3c] sm:$0xf]
    %s600 = scalar_lea.vmem %s6, 1
    %v601 = vld [vmem:[%s600] sm:$0x1]
    %s602 = scalar_lea.vmem [#allocation8], 64
    %v603 = vld [vmem:[%s602] sm:$0xf]
    %v604 = vld [vmem:[%s602 + $0x4] sm:$0xf]
    %v605 = vld [vmem:[%s602 + $0x8] sm:$0xf]
    %v606 = vld [vmem:[%s602 + $0xc] sm:$0xf]
    %v607 = vld [vmem:[%s602 + $0x10] sm:$0xf]
    %v608 = vld [vmem:[%s602 + $0x14] sm:$0xf]
    %v609 = vld [vmem:[%s602 + $0x18] sm:$0xf]
    %v610 = vld [vmem:[%s602 + $0x1c] sm:$0xf]
    %v611 = vld [vmem:[%s602 + $0x20] sm:$0xf]
    %v612 = vld [vmem:[%s602 + $0x24] sm:$0xf]
    %v613 = vld [vmem:[%s602 + $0x28] sm:$0xf]
    %v614 = vld [vmem:[%s602 + $0x2c] sm:$0xf]
    %v615 = vld [vmem:[%s602 + $0x30] sm:$0xf]
    %v616 = vld [vmem:[%s602 + $0x34] sm:$0xf]
    %v617 = vld [vmem:[%s602 + $0x38] sm:$0xf]
    %v618 = vld [vmem:[%s602 + $0x3c] sm:$0xf]
    %s619 = scalar_lea.vmem %s8, 1
    %v620 = vld [vmem:[%s619] sm:$0x1]
    %621 = vadd.xlane.f32.xlu0 %v574
    %v622 = vpop.xlane.xlu0 %621
    %v623 = vmul.f32 %v622, 0.03125
    %v624 = vsub.f32 %v574, %v623
    %v625 = vsel %vm227, %v624, 0.0
    %v626 = vmul.f32 %v625, %v625
    %627 = vadd.xlane.f32.xlu0 %v626
    %v628 = vpop.xlane.xlu0 %627
    %v629 = vmul.f32 %v628, 0.03125
    %v630 = vadd.f32 %v629, 1e-05
    %v631 = vrsqrt.pop %v630
    %v632 = vmul.f32 %v625, %v631
    %v634 = vlaneseq
    %v635 = vshrl.u32 %v634, 7
    %v636 = vsub.s32 0, %v635
    %v637 = vrot.slane %v580, %v636
    %v639 = vmul.f32 %v632, %v637
    %v641 = vlaneseq
    %v642 = vshrl.u32 %v641, 7
    %v643 = vsub.s32 0, %v642
    %v644 = vrot.slane %v582, %v643
    %v646 = vadd.f32 %v639, %v644
    %v647 = vpack.c.bf16 %v646, %v646
    %v649 = vlaneseq
    %v650 = vshrl.u32 %v649, 7
    %v651 = vsub.s32 0, %v650
    %v652 = vrot.slane %v601, %v651
    %v670 = vunpack.c.l.b16 %v584
    %v671 = vunpack.c.l.b16 %v585
    %v672 = vunpack.c.l.b16 %v586
    %v673 = vunpack.c.l.b16 %v587
    %v674 = vunpack.c.l.b16 %v588
    %v675 = vunpack.c.l.b16 %v589
    %v676 = vunpack.c.l.b16 %v590
    %v677 = vunpack.c.l.b16 %v591
    %v678 = vunpack.c.l.b16 %v592
    %v679 = vunpack.c.l.b16 %v593
    %v680 = vunpack.c.l.b16 %v594
    %v681 = vunpack.c.l.b16 %v595
    %v682 = vunpack.c.l.b16 %v596
    %v683 = vunpack.c.l.b16 %v597
    %v684 = vunpack.c.l.b16 %v598
    %v685 = vunpack.c.l.b16 %v599
    %v686 = vpack.c.b16 %v671, %v670
    %v687 = vpack.c.b16 %v673, %v672
    %v688 = vpack.c.b16 %v675, %v674
    %v689 = vpack.c.b16 %v677, %v676
    %v690 = vpack.c.b16 %v679, %v678
    %v691 = vpack.c.b16 %v681, %v680
    %v692 = vpack.c.b16 %v683, %v682
    %v693 = vpack.c.b16 %v685, %v684
    %702 = vmatprep.subr.bf16.mxu0 0
    %703 = vmatpush1.bf16.msra.mxu0 %v686
    %704 = vmatprep.subr.bf16.mxu0 0
    %705 = vmatpush1.bf16.msra.mxu0 %v687
    %706 = vmatprep.subr.bf16.mxu0 0
    %707 = vmatpush1.bf16.msra.mxu0 %v688
    %708 = vmatprep.subr.bf16.mxu0 0
    %709 = vmatpush1.bf16.msra.mxu0 %v689
    %710 = vmatprep.subr.bf16.mxu0 0
    %711 = vmatpush1.bf16.msra.mxu0 %v690
    %712 = vmatprep.subr.bf16.mxu0 0
    %713 = vmatpush1.bf16.msra.mxu0 %v691
    %714 = vmatprep.subr.bf16.mxu0 0
    %715 = vmatpush1.bf16.msra.mxu0 %v692
    %716 = vmatprep.subr.bf16.mxu0 0
    %717 = vmatpush1.bf16.msra.mxu0 %v693
    %718 = vmatprep.subr.bf16.mxu0 0
    %719 = vmatpush1.bf16.msra.mxu0 0
    %720 = vmatprep.subr.bf16.mxu0 0
    %721 = vmatpush1.bf16.msra.mxu0 0
    %722 = vmatprep.subr.bf16.mxu0 0
    %723 = vmatpush1.bf16.msra.mxu0 0
    %724 = vmatprep.subr.bf16.mxu0 0
    %725 = vmatpush1.bf16.msra.mxu0 0
    %726 = vmatprep.subr.bf16.mxu0 0
    %727 = vmatpush1.bf16.msra.mxu0 0
    %728 = vmatprep.subr.bf16.mxu0 0
    %729 = vmatpush1.bf16.msra.mxu0 0
    %730 = vmatprep.subr.bf16.mxu0 0
    %731 = vmatpush1.bf16.msra.mxu0 0
    %732 = vmatprep.subr.bf16.mxu0 0
    %733 = vmatpush1.bf16.msra.mxu0 0
    %734 = vmatprep.mubr.bf16.mxu0 0
    %735 = vmatmul.mubr.bf16.gmra.mrb[0].mxu0 %v647
    %v736 = vpop.f32.mrb[0].mxu0
    %v737 = vadd.f32 %v652, %v736
    %v738 = vpop.f32.mrb[0].mxu0
    %v739 = vpop.f32.mrb[0].mxu0
    %v740 = vpop.f32.mrb[0].mxu0
    %741 = vdwg.mxu0
    %v742 = vmax.f32 %v737, 0.0
    %v743 = vpack.c.bf16 %v742, %v742
    %v745 = vlaneseq
    %v746 = vshrl.u32 %v745, 7
    %v747 = vsub.s32 0, %v746
    %v748 = vrot.slane %v620, %v747
    %v766 = vunpack.c.l.b16 %v603
    %v767 = vunpack.c.l.b16 %v604
    %v768 = vunpack.c.l.b16 %v605
    %v769 = vunpack.c.l.b16 %v606
    %v770 = vunpack.c.l.b16 %v607
    %v771 = vunpack.c.l.b16 %v608
    %v772 = vunpack.c.l.b16 %v609
    %v773 = vunpack.c.l.b16 %v610
    %v774 = vunpack.c.l.b16 %v611
    %v775 = vunpack.c.l.b16 %v612
    %v776 = vunpack.c.l.b16 %v613
    %v777 = vunpack.c.l.b16 %v614
    %v778 = vunpack.c.l.b16 %v615
    %v779 = vunpack.c.l.b16 %v616
    %v780 = vunpack.c.l.b16 %v617
    %v781 = vunpack.c.l.b16 %v618
    %v782 = vpack.c.b16 %v767, %v766
    %v783 = vpack.c.b16 %v769, %v768
    %v784 = vpack.c.b16 %v771, %v770
    %v785 = vpack.c.b16 %v773, %v772
    %v786 = vpack.c.b16 %v775, %v774
    %v787 = vpack.c.b16 %v777, %v776
    %v788 = vpack.c.b16 %v779, %v778
    %v789 = vpack.c.b16 %v781, %v780
    %798 = vmatprep.subr.bf16.mxu0 0
    %799 = vmatpush1.bf16.msra.mxu0 %v782
    %800 = vmatprep.subr.bf16.mxu0 0
    %801 = vmatpush1.bf16.msra.mxu0 %v783
    %802 = vmatprep.subr.bf16.mxu0 0
    %803 = vmatpush1.bf16.msra.mxu0 %v784
    %804 = vmatprep.subr.bf16.mxu0 0
    %805 = vmatpush1.bf16.msra.mxu0 %v785
    %806 = vmatprep.subr.bf16.mxu0 0
    %807 = vmatpush1.bf16.msra.mxu0 %v786
    %808 = vmatprep.subr.bf16.mxu0 0
    %809 = vmatpush1.bf16.msra.mxu0 %v787
    %810 = vmatprep.subr.bf16.mxu0 0
    %811 = vmatpush1.bf16.msra.mxu0 %v788
    %812 = vmatprep.subr.bf16.mxu0 0
    %813 = vmatpush1.bf16.msra.mxu0 %v789
    %814 = vmatprep.subr.bf16.mxu0 0
    %815 = vmatpush1.bf16.msra.mxu0 0
    %816 = vmatprep.subr.bf16.mxu0 0
    %817 = vmatpush1.bf16.msra.mxu0 0
    %818 = vmatprep.subr.bf16.mxu0 0
    %819 = vmatpush1.bf16.msra.mxu0 0
    %820 = vmatprep.subr.bf16.mxu0 0
    %821 = vmatpush1.bf16.msra.mxu0 0
    %822 = vmatprep.subr.bf16.mxu0 0
    %823 = vmatpush1.bf16.msra.mxu0 0
    %824 = vmatprep.subr.bf16.mxu0 0
    %825 = vmatpush1.bf16.msra.mxu0 0
    %826 = vmatprep.subr.bf16.mxu0 0
    %827 = vmatpush1.bf16.msra.mxu0 0
    %828 = vmatprep.subr.bf16.mxu0 0
    %829 = vmatpush1.bf16.msra.mxu0 0
    %830 = vmatprep.mubr.bf16.mxu0 0
    %831 = vmatmul.mubr.bf16.gmra.mrb[0].mxu0 %v743
    %v832 = vpop.f32.mrb[0].mxu0
    %v833 = vadd.f32 %v748, %v832
    %v834 = vpop.f32.mrb[0].mxu0
    %v835 = vpop.f32.mrb[0].mxu0
    %v836 = vpop.f32.mrb[0].mxu0
    %837 = vdwg.mxu0
    %v838 = vadd.f32 %v574, %v833
    %839 = vadd.xlane.f32.xlu0 %v838
    %v840 = vpop.xlane.xlu0 %839
    %v841 = vmul.f32 %v840, 0.03125
    %v842 = vsub.f32 %v838, %v841
    %v843 = vsel %vm227, %v842, 0.0
    %v844 = vmul.f32 %v843, %v843
    %845 = vadd.xlane.f32.xlu0 %v844
    %v846 = vpop.xlane.xlu0 %845
    %v847 = vmul.f32 %v846, 0.03125
    %v848 = vadd.f32 %v847, 1e-05
    %v849 = vrsqrt.pop %v848
    %v850 = vmul.f32 %v843, %v849
    %v851 = vmul.f32 %v850, %v637
    %v852 = vadd.f32 %v851, %v644
    %v853 = vpack.c.bf16 %v852, %v852
    %854 = vmatprep.subr.bf16.mxu0 0
    %855 = vmatpush1.bf16.msra.mxu0 %v686
    %856 = vmatprep.subr.bf16.mxu0 0
    %857 = vmatpush1.bf16.msra.mxu0 %v687
    %858 = vmatprep.subr.bf16.mxu0 0
    %859 = vmatpush1.bf16.msra.mxu0 %v688
    %860 = vmatprep.subr.bf16.mxu0 0
    %861 = vmatpush1.bf16.msra.mxu0 %v689
    %862 = vmatprep.subr.bf16.mxu0 0
    %863 = vmatpush1.bf16.msra.mxu0 %v690
    %864 = vmatprep.subr.bf16.mxu0 0
    %865 = vmatpush1.bf16.msra.mxu0 %v691
    %866 = vmatprep.subr.bf16.mxu0 0
    %867 = vmatpush1.bf16.msra.mxu0 %v692
    %868 = vmatprep.subr.bf16.mxu0 0
    %869 = vmatpush1.bf16.msra.mxu0 %v693
    %870 = vmatprep.subr.bf16.mxu0 0
    %871 = vmatpush1.bf16.msra.mxu0 0
    %872 = vmatprep.subr.bf16.mxu0 0
    %873 = vmatpush1.bf16.msra.mxu0 0
    %874 = vmatprep.subr.bf16.mxu0 0
    %875 = vmatpush1.bf16.msra.mxu0 0
    %876 = vmatprep.subr.bf16.mxu0 0
    %877 = vmatpush1.bf16.msra.mxu0 0
    %878 = vmatprep.subr.bf16.mxu0 0
    %879 = vmatpush1.bf16.msra.mxu0 0
    %880 = vmatprep.subr.bf16.mxu0 0
    %881 = vmatpush1.bf16.msra.mxu0 0
    %882 = vmatprep.subr.bf16.mxu0 0
    %883 = vmatpush1.bf16.msra.mxu0 0
    %884 = vmatprep.subr.bf16.mxu0 0
    %885 = vmatpush1.bf16.msra.mxu0 0
    %886 = vmatprep.mubr.bf16.mxu0 0
    %887 = vmatmul.mubr.bf16.gmra.mrb[0].mxu0 %v853
    %v888 = vpop.f32.mrb[0].mxu0
    %v889 = vadd.f32 %v652, %v888
    %v890 = vpop.f32.mrb[0].mxu0
    %v891 = vpop.f32.mrb[0].mxu0
    %v892 = vpop.f32.mrb[0].mxu0
    %893 = vdwg.mxu0
    %v894 = vmax.f32 %v889, 0.0
    %v895 = vpack.c.bf16 %v894, %v894
    %896 = vmatprep.subr.bf16.mxu0 0
    %897 = vmatpush1.bf16.msra.mxu0 %v782
    %898 = vmatprep.subr.bf16.mxu0 0
    %899 = vmatpush1.bf16.msra.mxu0 %v783
    %900 = vmatprep.subr.bf16.mxu0 0
    %901 = vmatpush1.bf16.msra.mxu0 %v784
    %902 = vmatprep.subr.bf16.mxu0 0
    %903 = vmatpush1.bf16.msra.mxu0 %v785
    %904 = vmatprep.subr.bf16.mxu0 0
    %905 = vmatpush1.bf16.msra.mxu0 %v786
    %906 = vmatprep.subr.bf16.mxu0 0
    %907 = vmatpush1.bf16.msra.mxu0 %v787
    %908 = vmatprep.subr.bf16.mxu0 0
    %909 = vmatpush1.bf16.msra.mxu0 %v788
    %910 = vmatprep.subr.bf16.mxu0 0
    %911 = vmatpush1.bf16.msra.mxu0 %v789
    %912 = vmatprep.subr.bf16.mxu0 0
    %913 = vmatpush1.bf16.msra.mxu0 0
    %914 = vmatprep.subr.bf16.mxu0 0
    %915 = vmatpush1.bf16.msra.mxu0 0
    %916 = vmatprep.subr.bf16.mxu0 0
    %917 = vmatpush1.bf16.msra.mxu0 0
    %918 = vmatprep.subr.bf16.mxu0 0
    %919 = vmatpush1.bf16.msra.mxu0 0
    %920 = vmatprep.subr.bf16.mxu0 0
    %921 = vmatpush1.bf16.msra.mxu0 0
    %922 = vmatprep.subr.bf16.mxu0 0
    %923 = vmatpush1.bf16.msra.mxu0 0
    %924 = vmatprep.subr.bf16.mxu0 0
    %925 = vmatpush1.bf16.msra.mxu0 0
    %926 = vmatprep.subr.bf16.mxu0 0
    %927 = vmatpush1.bf16.msra.mxu0 0
    %928 = vmatprep.mubr.bf16.mxu0 0
    %929 = vmatmul.mubr.bf16.gmra.mrb[0].mxu0 %v895
    %v930 = vpop.f32.mrb[0].mxu0
    %v931 = vadd.f32 %v748, %v930
    %v932 = vpop.f32.mrb[0].mxu0
    %v933 = vpop.f32.mrb[0].mxu0
    %v934 = vpop.f32.mrb[0].mxu0
    %935 = vdwg.mxu0
    %v936 = vld [vmem:[%s9] sm:$0x1]
    %v937 = vld [vmem:[%s10] sm:$0x1]
    %938 = vadd.xlane.f32.xlu0 %v931
    %v939 = vpop.xlane.xlu0 %938
    %v940 = vmul.f32 %v939, 0.03125
    %v941 = vsub.f32 %v931, %v940
    %v942 = vsel %vm227, %v941, 0.0
    %v943 = vmul.f32 %v942, %v942
    %944 = vadd.xlane.f32.xlu0 %v943
    %v945 = vpop.xlane.xlu0 %944
    %v946 = vmul.f32 %v945, 0.03125
    %v947 = vadd.f32 %v946, 1e-05
    %v948 = vrsqrt.pop %v947
    %v949 = vmul.f32 %v942, %v948
    %v951 = vlaneseq
    %v952 = vshrl.u32 %v951, 7
    %v953 = vsub.s32 0, %v952
    %v954 = vrot.slane %v936, %v953
    %v956 = vmul.f32 %v949, %v954
    %v958 = vlaneseq
    %v959 = vshrl.u32 %v958, 7
    %v960 = vsub.s32 0, %v959
    %v961 = vrot.slane %v937, %v960
    %v963 = vadd.f32 %v956, %v961
    %v964 = vpack.c.bf16 %v963, %v963
    %v965 = vld [vmem:[#allocation10] sm:$0xf]
    %v966 = vld [vmem:[#allocation10 + $0x4] sm:$0xf]
    %v967 = vld [vmem:[#allocation10 + $0x8] sm:$0xf]
    %v968 = vld [vmem:[#allocation10 + $0xc] sm:$0xf]
    %v969 = vld [vmem:[#allocation10 + $0x10] sm:$0xf]
    %v970 = vld [vmem:[#allocation10 + $0x14] sm:$0xf]
    %v971 = vld [vmem:[#allocation10 + $0x18] sm:$0xf]
    %v972 = vld [vmem:[#allocation10 + $0x1c] sm:$0xf]
    %v973 = vld [vmem:[#allocation10 + $0x20] sm:$0xf]
    %v974 = vld [vmem:[#allocation10 + $0x24] sm:$0xf]
    %v975 = vld [vmem:[#allocation10 + $0x28] sm:$0xf]
    %v976 = vld [vmem:[#allocation10 + $0x2c] sm:$0xf]
    %v977 = vld [vmem:[#allocation10 + $0x30] sm:$0xf]
    %v978 = vld [vmem:[#allocation10 + $0x34] sm:$0xf]
    %v979 = vld [vmem:[#allocation10 + $0x38] sm:$0xf]
    %v980 = vld [vmem:[#allocation10 + $0x3c] sm:$0xf]
    %v981 = vld [vmem:[%s12] sm:$0x1]
    %v983 = vlaneseq
    %v984 = vshrl.u32 %v983, 7
    %v985 = vsub.s32 0, %v984
    %v986 = vrot.slane %v981, %v985
    %v1004 = vunpack.c.l.b16 %v965
    %v1005 = vunpack.c.l.b16 %v966
    %v1006 = vunpack.c.l.b16 %v967
    %v1007 = vunpack.c.l.b16 %v968
    %v1008 = vunpack.c.l.b16 %v969
    %v1009 = vunpack.c.l.b16 %v970
    %v1010 = vunpack.c.l.b16 %v971
    %v1011 = vunpack.c.l.b16 %v972
    %v1012 = vunpack.c.l.b16 %v973
    %v1013 = vunpack.c.l.b16 %v974
    %v1014 = vunpack.c.l.b16 %v975
    %v1015 = vunpack.c.l.b16 %v976
    %v1016 = vunpack.c.l.b16 %v977
    %v1017 = vunpack.c.l.b16 %v978
    %v1018 = vunpack.c.l.b16 %v979
    %v1019 = vunpack.c.l.b16 %v980
    %v1020 = vpack.c.b16 %v1005, %v1004
    %v1021 = vpack.c.b16 %v1007, %v1006
    %v1022 = vpack.c.b16 %v1009, %v1008
    %v1023 = vpack.c.b16 %v1011, %v1010
    %v1024 = vpack.c.b16 %v1013, %v1012
    %v1025 = vpack.c.b16 %v1015, %v1014
    %v1026 = vpack.c.b16 %v1017, %v1016
    %v1027 = vpack.c.b16 %v1019, %v1018
    %1036 = vmatprep.subr.bf16.mxu0 0
    %1037 = vmatpush1.bf16.msra.mxu0 %v1020
    %1038 = vmatprep.subr.bf16.mxu0 0
    %1039 = vmatpush1.bf16.msra.mxu0 %v1021
    %1040 = vmatprep.subr.bf16.mxu0 0
    %1041 = vmatpush1.bf16.msra.mxu0 %v1022
    %1042 = vmatprep.subr.bf16.mxu0 0
    %1043 = vmatpush1.bf16.msra.mxu0 %v1023
    %1044 = vmatprep.subr.bf16.mxu0 0
    %1045 = vmatpush1.bf16.msra.mxu0 %v1024
    %1046 = vmatprep.subr.bf16.mxu0 0
    %1047 = vmatpush1.bf16.msra.mxu0 %v1025
    %1048 = vmatprep.subr.bf16.mxu0 0
    %1049 = vmatpush1.bf16.msra.mxu0 %v1026
    %1050 = vmatprep.subr.bf16.mxu0 0
    %1051 = vmatpush1.bf16.msra.mxu0 %v1027
    %1052 = vmatprep.subr.bf16.mxu0 0
    %1053 = vmatpush1.bf16.msra.mxu0 0
    %1054 = vmatprep.subr.bf16.mxu0 0
    %1055 = vmatpush1.bf16.msra.mxu0 0
    %1056 = vmatprep.subr.bf16.mxu0 0
    %1057 = vmatpush1.bf16.msra.mxu0 0
    %1058 = vmatprep.subr.bf16.mxu0 0
    %1059 = vmatpush1.bf16.msra.mxu0 0
    %1060 = vmatprep.subr.bf16.mxu0 0
    %1061 = vmatpush1.bf16.msra.mxu0 0
    %1062 = vmatprep.subr.bf16.mxu0 0
    %1063 = vmatpush1.bf16.msra.mxu0 0
    %1064 = vmatprep.subr.bf16.mxu0 0
    %1065 = vmatpush1.bf16.msra.mxu0 0
    %1066 = vmatprep.subr.bf16.mxu0 0
    %1067 = vmatpush1.bf16.msra.mxu0 0
    %1068 = vmatprep.mubr.bf16.mxu0 0
    %1069 = vmatmul.mubr.bf16.gmra.mrb[0].mxu0 %v964
    %v1070 = vpop.f32.mrb[0].mxu0
    %v1071 = vadd.f32 %v986, %v1070
    %v1072 = vpop.f32.mrb[0].mxu0
    %v1073 = vpop.f32.mrb[0].mxu0
    %v1074 = vpop.f32.mrb[0].mxu0
    %1075 = vdwg.mxu0
    %1076 = vst [vmem:[#allocation11] sm:$0xff] %v1071
    // Predicated region
    $region74: #{tpu_custom_call.1} parent=1 // pred_check
      _
    $region75: #{tpu_custom_call.1} parent=1 // pred_check_branch
      %1078 = sbr.rel (0) target = $region77
    $region76: #{tpu_custom_call.1} parent=1 // pred_region
      %s1080 = ssub.s32 128, 128
      %1081 = vsyncadd [#allocation4], %s1080
      %s1083 = sshll.u32 [#allocation11], 4
      %s1084 = int_to_ptr.vmem [resolvable:$true] %s1083
      %1086 = dma.vmem_to_hbm [thread:$0]  %s1084, 128, %s13, [#allocation4]
    $region77: #{tpu_custom_call.1} parent=1 // pred_fallthru
      _
    // Predicated region
    $region78: #{tpu_custom_call.1} parent=1 // pred_check
      _
    $region79: #{tpu_custom_call.1} parent=1 // pred_check_branch
      %1088 = sbr.rel (0) target = $region81
    $region80: #{tpu_custom_call.1} parent=1 // pred_region
      %1089 = dma.done [#allocation4], 128
    $region81: #{tpu_custom_call.1} parent=1 // pred_fallthru
      _
    %1090 = vsyncpa [#allocation3], 1
    %1091 = vsyncpa [#allocation6], 1
    %1092 = vsyncpa [#allocation9], 1
    %1093 = vsyncpa [#allocation4], 1

</llo_original>
